<compile_context>
chip_gen: v7x
topology: tpu7x:2x2x1
jax: 0.10.0
libtpu: 0.0.40
codegen_flags: <defaults>
</compile_context>

<pallas_src>
import jax
import jax.numpy as jnp
from jax.experimental import pallas as pl
from jax.experimental.pallas import tpu as pltpu

# true / padded feature dims
D_IN = 768
D1 = 512
D2, D2P = 314, 384
D3 = 128
D4, D4P = 64, 128


def mlp_kernel(x_ref,
               w1_ref, b1_ref,
               w2_ref, b2_ref,
               w3_ref, b3_ref,
               w4_ref, b4_ref,
               o_ref):
    # quant stub -> identity (eager fp32 model); cast activations to bf16 for
    # the MXU, accumulate in fp32.
    x = x_ref[...].astype(jnp.bfloat16)

    # linear1: 768 -> 512
    h = jnp.dot(x, w1_ref[...], preferred_element_type=jnp.float32) + b1_ref[...]

    # linear2: 512 -> 384 (cols 314: are zero-padded)
    h = jnp.dot(h.astype(jnp.bfloat16), w2_ref[...],
                preferred_element_type=jnp.float32) + b2_ref[...]

    # dequant -> identity ; relu ; quant -> identity
    h = jnp.maximum(h, 0.0)

    # linear3: 384 -> 128 (rows 314: of w3 are zero, so padding is exact)
    h = jnp.dot(h.astype(jnp.bfloat16), w3_ref[...],
                preferred_element_type=jnp.float32) + b3_ref[...]

    # dequant -> identity ; relu ; quant -> identity
    h = jnp.maximum(h, 0.0)

    # linear4: 128 -> 128 (cols 64: are zero-padded; sliced off in wrapper)
    h = jnp.dot(h.astype(jnp.bfloat16), w4_ref[...],
                preferred_element_type=jnp.float32) + b4_ref[...]

    # dequant -> identity ; sigmoid (EUP exp + VPU)
    o_ref[...] = jax.nn.sigmoid(h)


def _round_up(n, m):
    return ((n + m - 1) // m) * m


@jax.jit
def mlp_forward(x, params):
    """x: (B, 768) float32. params: padded bf16 weights + fp32 biases."""
    B = x.shape[0]
    # batch tile: multiple of 8 (fp32 sublane), capped at 256
    TB = min(256, _round_up(B, 8))
    Bp = _round_up(B, TB)
    if Bp != B:
        x = jnp.pad(x, ((0, Bp - B), (0, 0)))

    x_spec = pl.BlockSpec((TB, D_IN), lambda i: (i, 0))
    out_spec = pl.BlockSpec((TB, D4P), lambda i: (i, 0))

    def wspec(shape):
        # weights/biases: constant block index -> resident, re-DMA skipped
        return pl.BlockSpec(shape, lambda i: (0, 0))

    in_specs = [
        x_spec,
        wspec((D_IN, D1)), wspec((1, D1)),
        wspec((D1, D2P)),  wspec((1, D2P)),
        wspec((D2P, D3)),  wspec((1, D3)),
        wspec((D3, D4P)),  wspec((1, D4P)),
    ]
    operands = (
        x,
        params["w1"], params["b1"],
        params["w2"], params["b2"],
        params["w3"], params["b3"],
        params["w4"], params["b4"],
    )

    out_padded = pl.pallas_call(
        mlp_kernel,
        out_shape=jax.ShapeDtypeStruct((Bp, D4P), jnp.float32),
        grid=(Bp // TB,),
        in_specs=in_specs,
        out_specs=out_spec,
        compiler_params=pltpu.CompilerParams(
            dimension_semantics=("parallel",),
            vmem_limit_bytes=64 * 1024 * 1024),
    )(*operands)

    # slice back to the true batch and the true 64 output features
    return out_padded[:B, :D4]


def init_params(key):
    """torch.nn.Linear-style init (uniform +-1/sqrt(fan_in)), then pad to
    lane-friendly shapes and cast weights to bf16. Padded entries are exactly
    zero so the padded network is mathematically identical to the original."""
    dims = [(D_IN, D1), (D1, D2), (D2, D3), (D3, D4)]
    padded = [(D_IN, D1), (D1, D2P), (D2P, D3), (D3, D4P)]
    params = {}
    keys = jax.random.split(key, 2 * len(dims))
    for i, ((fi, fo), (pi_, po)) in enumerate(zip(dims, padded)):
        bound = 1.0 / jnp.sqrt(jnp.float32(fi))
        w = jax.random.uniform(keys[2 * i], (fi, fo),
                               minval=-bound, maxval=bound, dtype=jnp.float32)
        b = jax.random.uniform(keys[2 * i + 1], (1, fo),
                               minval=-bound, maxval=bound, dtype=jnp.float32)
        w_pad = jnp.zeros((pi_, po), jnp.bfloat16).at[:fi, :fo].set(
            w.astype(jnp.bfloat16))
        b_pad = jnp.zeros((1, po), jnp.float32).at[:, :fo].set(b)
        params[f"w{i + 1}"] = w_pad
        params[f"b{i + 1}"] = b_pad
    return params


def reference_forward(x, params):
    """fp32 reference using the same (bf16-rounded, zero-padded) weights."""
    w1 = params["w1"].astype(jnp.float32)
    w2 = params["w2"].astype(jnp.float32)
    w3 = params["w3"].astype(jnp.float32)
    w4 = params["w4"].astype(jnp.float32)
    h = x @ w1 + params["b1"]
    h = h @ w2 + params["b2"]
    h = jnp.maximum(h, 0.0)
    h = h @ w3 + params["b3"]
    h = jnp.maximum(h, 0.0)
    h = h @ w4 + params["b4"]
    return jax.nn.sigmoid(h)[:, :D4]


if __name__ == "__main__":
    key = jax.random.PRNGKey(0)
    k_params, k_x = jax.random.split(key)

    params = init_params(k_params)
    batch = 8
    x = jax.random.normal(k_x, (batch, D_IN), dtype=jnp.float32)

    out = mlp_forward(x, params)
    out = jax.block_until_ready(out)

    ref = reference_forward(x, params)
    assert out.shape == (batch, D4), out.shape
    # bf16 matmul inputs with fp32 accumulation -> quantization-aware tolerance
    assert jnp.allclose(out, ref, atol=2e-2, rtol=2e-2), (
        "mismatch vs reference: max abs diff "
        f"{float(jnp.max(jnp.abs(out - ref)))}")

    print("KERNEL_OK")
</pallas_src>

<mosaic_0001>
module attributes {stable_mosaic.version = 11 : i64} {
  func.func @mlp_kernel(%arg0: i32, %arg1: memref<8x768xf32, #tpu.memory_space<vmem>>, %arg2: memref<768x512xbf16, #tpu.memory_space<vmem>>, %arg3: memref<1x512xf32, #tpu.memory_space<vmem>>, %arg4: memref<512x384xbf16, #tpu.memory_space<vmem>>, %arg5: memref<1x384xf32, #tpu.memory_space<vmem>>, %arg6: memref<384x128xbf16, #tpu.memory_space<vmem>>, %arg7: memref<1x128xf32, #tpu.memory_space<vmem>>, %arg8: memref<128x128xbf16, #tpu.memory_space<vmem>>, %arg9: memref<1x128xf32, #tpu.memory_space<vmem>>, %arg10: memref<8x128xf32, #tpu.memory_space<vmem>>) attributes {dimension_semantics = [#tpu.dimension_semantics<parallel>], iteration_bounds = array<i64: 1>, scalar_prefetch = 0 : i64, scratch_operands = 0 : i64, tpu.core_type = #tpu.core_type<tc>, window_params = [{transform_indices = @transform_0, window_bounds = array<i64: 8, 768>}, {pipeline_mode = #tpu.pipeline_mode<synchronous>, transform_indices = @transform_1, window_bounds = array<i64: 768, 512>}, {pipeline_mode = #tpu.pipeline_mode<synchronous>, transform_indices = @transform_2, window_bounds = array<i64: 1, 512>}, {pipeline_mode = #tpu.pipeline_mode<synchronous>, transform_indices = @transform_3, window_bounds = array<i64: 512, 384>}, {pipeline_mode = #tpu.pipeline_mode<synchronous>, transform_indices = @transform_4, window_bounds = array<i64: 1, 384>}, {pipeline_mode = #tpu.pipeline_mode<synchronous>, transform_indices = @transform_5, window_bounds = array<i64: 384, 128>}, {pipeline_mode = #tpu.pipeline_mode<synchronous>, transform_indices = @transform_6, window_bounds = array<i64: 1, 128>}, {pipeline_mode = #tpu.pipeline_mode<synchronous>, transform_indices = @transform_7, window_bounds = array<i64: 128, 128>}, {pipeline_mode = #tpu.pipeline_mode<synchronous>, transform_indices = @transform_8, window_bounds = array<i64: 1, 128>}, {transform_indices = @transform_9, window_bounds = array<i64: 8, 128>}]} {
    %c0 = arith.constant 0 : index
    %c0_0 = arith.constant 0 : index
    %0 = vector.load %arg1[%c0, %c0_0] : memref<8x768xf32, #tpu.memory_space<vmem>>, vector<8x768xf32>
    %1 = arith.truncf %0 : vector<8x768xf32> to vector<8x768xbf16>
    %c0_1 = arith.constant 0 : index
    %c0_2 = arith.constant 0 : index
    %2 = vector.load %arg2[%c0_1, %c0_2] : memref<768x512xbf16, #tpu.memory_space<vmem>>, vector<768x512xbf16>
    %cst = arith.constant dense<0.000000e+00> : vector<8x512xf32>
    %3 = tpu.matmul %1, %2, %cst {dimension_numbers = #tpu.dot_dimension_numbers<[1], [0], [0], [1], [0, 0, 1, 1], [], []>} : vector<8x768xbf16>, vector<768x512xbf16>, vector<8x512xf32> -> vector<8x512xf32>
    %c0_3 = arith.constant 0 : index
    %c0_4 = arith.constant 0 : index
    %4 = vector.load %arg3[%c0_3, %c0_4] : memref<1x512xf32, #tpu.memory_space<vmem>>, vector<1x512xf32>
    %5 = vector.broadcast %4 : vector<1x512xf32> to vector<8x512xf32>
    %6 = arith.addf %3, %5 : vector<8x512xf32>
    %7 = arith.truncf %6 : vector<8x512xf32> to vector<8x512xbf16>
    %c0_5 = arith.constant 0 : index
    %c0_6 = arith.constant 0 : index
    %8 = vector.load %arg4[%c0_5, %c0_6] : memref<512x384xbf16, #tpu.memory_space<vmem>>, vector<512x384xbf16>
    %cst_7 = arith.constant dense<0.000000e+00> : vector<8x384xf32>
    %9 = tpu.matmul %7, %8, %cst_7 {dimension_numbers = #tpu.dot_dimension_numbers<[1], [0], [0], [1], [0, 0, 1, 1], [], []>} : vector<8x512xbf16>, vector<512x384xbf16>, vector<8x384xf32> -> vector<8x384xf32>
    %c0_8 = arith.constant 0 : index
    %c0_9 = arith.constant 0 : index
    %10 = vector.load %arg5[%c0_8, %c0_9] : memref<1x384xf32, #tpu.memory_space<vmem>>, vector<1x384xf32>
    %11 = vector.broadcast %10 : vector<1x384xf32> to vector<8x384xf32>
    %12 = arith.addf %9, %11 : vector<8x384xf32>
    %cst_10 = arith.constant 0.000000e+00 : f32
    %13 = vector.broadcast %cst_10 : f32 to vector<8x384xf32>
    %14 = arith.maximumf %12, %13 : vector<8x384xf32>
    %15 = arith.truncf %14 : vector<8x384xf32> to vector<8x384xbf16>
    %c0_11 = arith.constant 0 : index
    %c0_12 = arith.constant 0 : index
    %16 = vector.load %arg6[%c0_11, %c0_12] : memref<384x128xbf16, #tpu.memory_space<vmem>>, vector<384x128xbf16>
    %cst_13 = arith.constant dense<0.000000e+00> : vector<8x128xf32>
    %17 = tpu.matmul %15, %16, %cst_13 {dimension_numbers = #tpu.dot_dimension_numbers<[1], [0], [0], [1], [0, 0, 1, 1], [], []>} : vector<8x384xbf16>, vector<384x128xbf16>, vector<8x128xf32> -> vector<8x128xf32>
    %c0_14 = arith.constant 0 : index
    %c0_15 = arith.constant 0 : index
    %18 = vector.load %arg7[%c0_14, %c0_15] : memref<1x128xf32, #tpu.memory_space<vmem>>, vector<1x128xf32>
    %19 = vector.broadcast %18 : vector<1x128xf32> to vector<8x128xf32>
    %20 = arith.addf %17, %19 : vector<8x128xf32>
    %cst_16 = arith.constant 0.000000e+00 : f32
    %21 = vector.broadcast %cst_16 : f32 to vector<8x128xf32>
    %22 = arith.maximumf %20, %21 : vector<8x128xf32>
    %23 = arith.truncf %22 : vector<8x128xf32> to vector<8x128xbf16>
    %c0_17 = arith.constant 0 : index
    %c0_18 = arith.constant 0 : index
    %24 = vector.load %arg8[%c0_17, %c0_18] : memref<128x128xbf16, #tpu.memory_space<vmem>>, vector<128x128xbf16>
    %cst_19 = arith.constant dense<0.000000e+00> : vector<8x128xf32>
    %25 = tpu.matmul %23, %24, %cst_19 {dimension_numbers = #tpu.dot_dimension_numbers<[1], [0], [0], [1], [0, 0, 1, 1], [], []>} : vector<8x128xbf16>, vector<128x128xbf16>, vector<8x128xf32> -> vector<8x128xf32>
    %c0_20 = arith.constant 0 : index
    %c0_21 = arith.constant 0 : index
    %26 = vector.load %arg9[%c0_20, %c0_21] : memref<1x128xf32, #tpu.memory_space<vmem>>, vector<1x128xf32>
    %27 = vector.broadcast %26 : vector<1x128xf32> to vector<8x128xf32>
    %28 = arith.addf %25, %27 : vector<8x128xf32>
    %29 = arith.negf %28 : vector<8x128xf32>
    %30 = math.exp %29 : vector<8x128xf32>
    %cst_22 = arith.constant 1.000000e+00 : f32
    %31 = vector.broadcast %cst_22 : f32 to vector<8x128xf32>
    %32 = arith.addf %31, %30 : vector<8x128xf32>
    %33 = arith.divf %31, %32 : vector<8x128xf32>
    %c0_23 = arith.constant 0 : index
    %c0_24 = arith.constant 0 : index
    %34 = vector.load %arg10[%c0_23, %c0_24] : memref<8x128xf32, #tpu.memory_space<vmem>>, vector<8x128xf32>
    tpu.vector_store %arg10[%c0_23, %c0_24], %33 {strides = array<i32>} : memref<8x128xf32, #tpu.memory_space<vmem>>, vector<8x128xf32>,
    return
  }
  func.func @transform_0(%arg0: i32) -> (i32, i32) {
    %c0_i32 = arith.constant 0 : i32
    %c0_i32_0 = arith.constant 0 : i32
    return %arg0, %c0_i32 : i32, i32
  }
  func.func @transform_1(%arg0: i32) -> (i32, i32) {
    %c0_i32 = arith.constant 0 : i32
    %c0_i32_0 = arith.constant 0 : i32
    %c0_i32_1 = arith.constant 0 : i32
    return %c0_i32, %c0_i32_0 : i32, i32
  }
  func.func @transform_2(%arg0: i32) -> (i32, i32) {
    %c0_i32 = arith.constant 0 : i32
    %c0_i32_0 = arith.constant 0 : i32
    %c0_i32_1 = arith.constant 0 : i32
    return %c0_i32, %c0_i32_0 : i32, i32
  }
  func.func @transform_3(%arg0: i32) -> (i32, i32) {
    %c0_i32 = arith.constant 0 : i32
    %c0_i32_0 = arith.constant 0 : i32
    %c0_i32_1 = arith.constant 0 : i32
    return %c0_i32, %c0_i32_0 : i32, i32
  }
  func.func @transform_4(%arg0: i32) -> (i32, i32) {
    %c0_i32 = arith.constant 0 : i32
    %c0_i32_0 = arith.constant 0 : i32
    %c0_i32_1 = arith.constant 0 : i32
    return %c0_i32, %c0_i32_0 : i32, i32
  }
  func.func @transform_5(%arg0: i32) -> (i32, i32) {
    %c0_i32 = arith.constant 0 : i32
    %c0_i32_0 = arith.constant 0 : i32
    %c0_i32_1 = arith.constant 0 : i32
    return %c0_i32, %c0_i32_0 : i32, i32
  }
  func.func @transform_6(%arg0: i32) -> (i32, i32) {
    %c0_i32 = arith.constant 0 : i32
    %c0_i32_0 = arith.constant 0 : i32
    %c0_i32_1 = arith.constant 0 : i32
    return %c0_i32, %c0_i32_0 : i32, i32
  }
  func.func @transform_7(%arg0: i32) -> (i32, i32) {
    %c0_i32 = arith.constant 0 : i32
    %c0_i32_0 = arith.constant 0 : i32
    %c0_i32_1 = arith.constant 0 : i32
    return %c0_i32, %c0_i32_0 : i32, i32
  }
  func.func @transform_8(%arg0: i32) -> (i32, i32) {
    %c0_i32 = arith.constant 0 : i32
    %c0_i32_0 = arith.constant 0 : i32
    %c0_i32_1 = arith.constant 0 : i32
    return %c0_i32, %c0_i32_0 : i32, i32
  }
  func.func @transform_9(%arg0: i32) -> (i32, i32) {
    %c0_i32 = arith.constant 0 : i32
    %c0_i32_0 = arith.constant 0 : i32
    return %arg0, %c0_i32 : i32, i32
  }
}

</mosaic_0001>

<llo_original>
// kernel: mlp_forward.1
$region0: #{mlp_forward.1}
  #allocation0 [shape = 'u32[]', space=smem, size = 0x4, offset = 0x4, fixed_abs, tag = 'smem constant byte address 0x4 - core index']
  #allocation1 [shape = 'u32[144,128]{1,0:T(1,128)}', space=vmem, size = 0x12000, scoped, tag = 'internal scratch']
  %s0 = inlined_call_operand.hbm [shape: f32[8,768], index: 0, kind: input, shape index: {}]
  %s1 = inlined_call_operand.hbm [shape: bf16[768,512], index: 1, kind: input, shape index: {}]
  %s2 = inlined_call_operand.hbm [shape: f32[1,512], index: 2, kind: input, shape index: {}]
  %s3 = inlined_call_operand.hbm [shape: bf16[512,384], index: 3, kind: input, shape index: {}]
  %s4 = inlined_call_operand.hbm [shape: f32[1,384], index: 4, kind: input, shape index: {}]
  %s5 = inlined_call_operand.hbm [shape: bf16[384,128], index: 5, kind: input, shape index: {}]
  %s6 = inlined_call_operand.hbm [shape: f32[1,128], index: 6, kind: input, shape index: {}]
  %s7 = inlined_call_operand.hbm [shape: bf16[128,128], index: 7, kind: input, shape index: {}]
  %s8 = inlined_call_operand.hbm [shape: f32[1,128], index: 8, kind: input, shape index: {}]
  %s9 = inlined_call_operand.hbm [shape: f32[8,128], index: 9, kind: output, shape index: {}]
  %s10 = sld [smem:[#allocation0]]
  $region82: #{mlp_forward.1} parent=0
    _
  %s12 = ssub.s32 1, %s10
  %s13 = scalar_select 0, %s12, %s10
  $region1: #{mlp_forward.1} parent=0
    #allocation2 [shape = 'u8[24576]{0}', space=vmem, size = 0x6000, scoped, tag = 'input window, operand 0, single buffered']
    #allocation3 [shape = 's32[1]{0}', space=sflag, size = 0x4, scoped, tag = 'scoped memory for mlp_forward.1']
    #allocation4 [shape = 's32[1]{0}', space=sflag, size = 0x4, scoped, tag = 'scoped memory for mlp_forward.1']
    #allocation5 [shape = 'u8[786432]{0}', space=vmem, size = 0xc0000, scoped, tag = 'input window, operand 1, single buffered']
    #allocation6 [shape = 's32[1]{0}', space=sflag, size = 0x4, scoped, tag = 'scoped memory for mlp_forward.1']
    #allocation7 [shape = 'u8[2048]{0}', space=vmem, size = 0x800, scoped, tag = 'input window, operand 2, single buffered']
    #allocation8 [shape = 'u8[393216]{0}', space=vmem, size = 0x60000, scoped, tag = 'input window, operand 3, single buffered']
    #allocation9 [shape = 's32[1]{0}', space=sflag, size = 0x4, scoped, tag = 'scoped memory for mlp_forward.1']
    #allocation10 [shape = 'u8[1536]{0}', space=vmem, size = 0x800, scoped, tag = 'input window, operand 4, single buffered']
    #allocation11 [shape = 'u8[98304]{0}', space=vmem, size = 0x18000, scoped, tag = 'input window, operand 5, single buffered']
    #allocation12 [shape = 's32[1]{0}', space=sflag, size = 0x4, scoped, tag = 'scoped memory for mlp_forward.1']
    #allocation13 [shape = 'u8[512]{0}', space=vmem, size = 0x400, scoped, tag = 'input window, operand 6, single buffered']
    #allocation14 [shape = 'u8[32768]{0}', space=vmem, size = 0x8000, scoped, tag = 'input window, operand 7, single buffered']
    #allocation15 [shape = 's32[1]{0}', space=sflag, size = 0x4, scoped, tag = 'scoped memory for mlp_forward.1']
    #allocation16 [shape = 'u8[512]{0}', space=vmem, size = 0x400, scoped, tag = 'input window, operand 8, single buffered']
    #allocation17 [shape = 'u8[4096]{0}', space=vmem, size = 0x1000, scoped, tag = 'output window, operand 0, single buffered']
    %14 = vsyncpa [#allocation3], 0
    %15 = vsyncpa [#allocation6], 0
    %16 = vsyncpa [#allocation9], 0
    %17 = vsyncpa [#allocation12], 0
    %18 = vsyncpa [#allocation15], 0
    %19 = vsyncpa [#allocation4], 0
    // Predicated region
    $region2: #{mlp_forward.1} parent=1 // pred_check
      _
    $region3: #{mlp_forward.1} parent=1 // pred_check_branch
      %21 = sbr.rel (0) target = $region5
    $region4: #{mlp_forward.1} parent=1 // pred_region
      %s23 = ssub.s32 768, 768
      %24 = vsyncadd [#allocation3], %s23
      %s26 = sshll.u32 [#allocation2], 4
      %s27 = int_to_ptr.vmem [resolvable:$true] %s26
      %29 = dma.hbm_to_vmem [thread:$0]  %s0, 768, %s27, [#allocation3]
    $region5: #{mlp_forward.1} parent=1 // pred_fallthru
      _
    // Predicated region
    $region6: #{mlp_forward.1} parent=1 // pred_check
      _
    $region7: #{mlp_forward.1} parent=1 // pred_check_branch
      %31 = sbr.rel (0) target = $region9
    $region8: #{mlp_forward.1} parent=1 // pred_region
      %s33 = ssub.s32 24576, 24576
      %34 = vsyncadd [#allocation6], %s33
      %s35 = sshll.u32 [#allocation5], 4
      %s36 = int_to_ptr.vmem [resolvable:$true] %s35
      %41 = dma.hbm_to_vmem [thread:$0]  %s1, 24576, %s36, [#allocation6], 256, 256, 16
    $region9: #{mlp_forward.1} parent=1 // pred_fallthru
      _
    // Predicated region
    $region10: #{mlp_forward.1} parent=1 // pred_check
      _
    $region11: #{mlp_forward.1} parent=1 // pred_check_branch
      %43 = sbr.rel (0) target = $region13
    $region12: #{mlp_forward.1} parent=1 // pred_region
      %s45 = ssub.s32 64, 64
      %46 = vsyncadd [#allocation6], %s45
      %s48 = sshll.u32 [#allocation7], 4
      %s49 = int_to_ptr.vmem [resolvable:$true] %s48
      %51 = dma.hbm_to_vmem [thread:$0]  %s2, 64, %s49, [#allocation6]
    $region13: #{mlp_forward.1} parent=1 // pred_fallthru
      _
    // Predicated region
    $region14: #{mlp_forward.1} parent=1 // pred_check
      _
    $region15: #{mlp_forward.1} parent=1 // pred_check_branch
      %53 = sbr.rel (0) target = $region17
    $region16: #{mlp_forward.1} parent=1 // pred_region
      %s55 = ssub.s32 12288, 12288
      %56 = vsyncadd [#allocation9], %s55
      %s57 = sshll.u32 [#allocation8], 4
      %s58 = int_to_ptr.vmem [resolvable:$true] %s57
      %63 = dma.hbm_to_vmem [thread:$0]  %s3, 12288, %s58, [#allocation9], 192, 192, 12
    $region17: #{mlp_forward.1} parent=1 // pred_fallthru
      _
    // Predicated region
    $region18: #{mlp_forward.1} parent=1 // pred_check
      _
    $region19: #{mlp_forward.1} parent=1 // pred_check_branch
      %65 = sbr.rel (0) target = $region21
    $region20: #{mlp_forward.1} parent=1 // pred_region
      %s67 = ssub.s32 48, 48
      %68 = vsyncadd [#allocation9], %s67
      %s70 = sshll.u32 [#allocation10], 4
      %s71 = int_to_ptr.vmem [resolvable:$true] %s70
      %73 = dma.hbm_to_vmem [thread:$0]  %s4, 48, %s71, [#allocation9]
    $region21: #{mlp_forward.1} parent=1 // pred_fallthru
      _
    // Predicated region
    $region22: #{mlp_forward.1} parent=1 // pred_check
      _
    $region23: #{mlp_forward.1} parent=1 // pred_check_branch
      %75 = sbr.rel (0) target = $region25
    $region24: #{mlp_forward.1} parent=1 // pred_region
      %s77 = ssub.s32 3072, 3072
      %78 = vsyncadd [#allocation12], %s77
      %s79 = sshll.u32 [#allocation11], 4
      %s80 = int_to_ptr.vmem [resolvable:$true] %s79
      %85 = dma.hbm_to_vmem [thread:$0]  %s5, 3072, %s80, [#allocation12], 64, 64, 4
    $region25: #{mlp_forward.1} parent=1 // pred_fallthru
      _
    // Predicated region
    $region26: #{mlp_forward.1} parent=1 // pred_check
      _
    $region27: #{mlp_forward.1} parent=1 // pred_check_branch
      %87 = sbr.rel (0) target = $region29
    $region28: #{mlp_forward.1} parent=1 // pred_region
      %s89 = ssub.s32 16, 16
      %90 = vsyncadd [#allocation12], %s89
      %s92 = sshll.u32 [#allocation13], 4
      %s93 = int_to_ptr.vmem [resolvable:$true] %s92
      %95 = dma.hbm_to_vmem [thread:$0]  %s6, 16, %s93, [#allocation12]
    $region29: #{mlp_forward.1} parent=1 // pred_fallthru
      _
    // Predicated region
    $region30: #{mlp_forward.1} parent=1 // pred_check
      _
    $region31: #{mlp_forward.1} parent=1 // pred_check_branch
      %97 = sbr.rel (0) target = $region33
    $region32: #{mlp_forward.1} parent=1 // pred_region
      %s99 = ssub.s32 1024, 1024
      %100 = vsyncadd [#allocation15], %s99
      %s101 = sshll.u32 [#allocation14], 4
      %s102 = int_to_ptr.vmem [resolvable:$true] %s101
      %107 = dma.hbm_to_vmem [thread:$0]  %s7, 1024, %s102, [#allocation15], 64, 64, 4
    $region33: #{mlp_forward.1} parent=1 // pred_fallthru
      _
    // Predicated region
    $region34: #{mlp_forward.1} parent=1 // pred_check
      _
    $region35: #{mlp_forward.1} parent=1 // pred_check_branch
      %109 = sbr.rel (0) target = $region37
    $region36: #{mlp_forward.1} parent=1 // pred_region
      %s111 = ssub.s32 16, 16
      %112 = vsyncadd [#allocation15], %s111
      %s114 = sshll.u32 [#allocation16], 4
      %s115 = int_to_ptr.vmem [resolvable:$true] %s114
      %117 = dma.hbm_to_vmem [thread:$0]  %s8, 16, %s115, [#allocation15]
    $region37: #{mlp_forward.1} parent=1 // pred_fallthru
      _
    // Predicated region
    $region38: #{mlp_forward.1} parent=1 // pred_check
      _
    $region39: #{mlp_forward.1} parent=1 // pred_check_branch
      %119 = sbr.rel (0) target = $region41
    $region40: #{mlp_forward.1} parent=1 // pred_region
      %120 = dma.done [#allocation3], 768
    $region41: #{mlp_forward.1} parent=1 // pred_fallthru
      _
    // Predicated region
    $region42: #{mlp_forward.1} parent=1 // pred_check
      _
    $region43: #{mlp_forward.1} parent=1 // pred_check_branch
      %122 = sbr.rel (0) target = $region45
    $region44: #{mlp_forward.1} parent=1 // pred_region
      %123 = dma.done [#allocation6], 24576
    $region45: #{mlp_forward.1} parent=1 // pred_fallthru
      _
    // Predicated region
    $region46: #{mlp_forward.1} parent=1 // pred_check
      _
    $region47: #{mlp_forward.1} parent=1 // pred_check_branch
      %125 = sbr.rel (0) target = $region49
    $region48: #{mlp_forward.1} parent=1 // pred_region
      %126 = dma.done [#allocation6], 64
    $region49: #{mlp_forward.1} parent=1 // pred_fallthru
      _
    // Predicated region
    $region50: #{mlp_forward.1} parent=1 // pred_check
      _
    $region51: #{mlp_forward.1} parent=1 // pred_check_branch
      %128 = sbr.rel (0) target = $region53
    $region52: #{mlp_forward.1} parent=1 // pred_region
      %129 = dma.done [#allocation9], 12288
    $region53: #{mlp_forward.1} parent=1 // pred_fallthru
      _
    // Predicated region
    $region54: #{mlp_forward.1} parent=1 // pred_check
      _
    $region55: #{mlp_forward.1} parent=1 // pred_check_branch
      %131 = sbr.rel (0) target = $region57
    $region56: #{mlp_forward.1} parent=1 // pred_region
      %132 = dma.done [#allocation9], 48
    $region57: #{mlp_forward.1} parent=1 // pred_fallthru
      _
    // Predicated region
    $region58: #{mlp_forward.1} parent=1 // pred_check
      _
    $region59: #{mlp_forward.1} parent=1 // pred_check_branch
      %134 = sbr.rel (0) target = $region61
    $region60: #{mlp_forward.1} parent=1 // pred_region
      %135 = dma.done [#allocation12], 3072
    $region61: #{mlp_forward.1} parent=1 // pred_fallthru
      _
    // Predicated region
    $region62: #{mlp_forward.1} parent=1 // pred_check
      _
    $region63: #{mlp_forward.1} parent=1 // pred_check_branch
      %137 = sbr.rel (0) target = $region65
    $region64: #{mlp_forward.1} parent=1 // pred_region
      %138 = dma.done [#allocation12], 16
    $region65: #{mlp_forward.1} parent=1 // pred_fallthru
      _
    // Predicated region
    $region66: #{mlp_forward.1} parent=1 // pred_check
      _
    $region67: #{mlp_forward.1} parent=1 // pred_check_branch
      %140 = sbr.rel (0) target = $region69
    $region68: #{mlp_forward.1} parent=1 // pred_region
      %141 = dma.done [#allocation15], 1024
    $region69: #{mlp_forward.1} parent=1 // pred_fallthru
      _
    // Predicated region
    $region70: #{mlp_forward.1} parent=1 // pred_check
      _
    $region71: #{mlp_forward.1} parent=1 // pred_check_branch
      %143 = sbr.rel (0) target = $region73
    $region72: #{mlp_forward.1} parent=1 // pred_region
      %144 = dma.done [#allocation15], 16
    $region73: #{mlp_forward.1} parent=1 // pred_fallthru
      _
    %v146 = vld [vmem:[#allocation2] sm:$0xff]
    %v147 = vld [vmem:[#allocation2 + $0x8] sm:$0xff]
    %v148 = vld [vmem:[#allocation2 + $0x10] sm:$0xff]
    %v149 = vld [vmem:[#allocation2 + $0x18] sm:$0xff]
    %v150 = vld [vmem:[#allocation2 + $0x20] sm:$0xff]
    %v151 = vld [vmem:[#allocation2 + $0x28] sm:$0xff]
    %v152 = vpack.c.bf16 %v146, %v146
    %v153 = vpack.c.bf16 %v147, %v147
    %v154 = vpack.c.bf16 %v148, %v148
    %v155 = vpack.c.bf16 %v149, %v149
    %v156 = vpack.c.bf16 %v150, %v150
    %v157 = vpack.c.bf16 %v151, %v151
    %v158 = vld [vmem:[#allocation5] sm:$0xff]
    %v159 = vld [vmem:[#allocation5 + $0x8] sm:$0xff]
    %v160 = vld [vmem:[#allocation5 + $0x10] sm:$0xff]
    %v161 = vld [vmem:[#allocation5 + $0x18] sm:$0xff]
    %v162 = vld [vmem:[#allocation5 + $0x20] sm:$0xff]
    %v163 = vld [vmem:[#allocation5 + $0x28] sm:$0xff]
    %v164 = vld [vmem:[#allocation5 + $0x30] sm:$0xff]
    %v165 = vld [vmem:[#allocation5 + $0x38] sm:$0xff]
    %v166 = vld [vmem:[#allocation5 + $0x40] sm:$0xff]
    %v167 = vld [vmem:[#allocation5 + $0x48] sm:$0xff]
    %v168 = vld [vmem:[#allocation5 + $0x50] sm:$0xff]
    %v169 = vld [vmem:[#allocation5 + $0x58] sm:$0xff]
    %v170 = vld [vmem:[#allocation5 + $0x60] sm:$0xff]
    %v171 = vld [vmem:[#allocation5 + $0x68] sm:$0xff]
    %v172 = vld [vmem:[#allocation5 + $0x70] sm:$0xff]
    %v173 = vld [vmem:[#allocation5 + $0x78] sm:$0xff]
    %v174 = vld [vmem:[#allocation5 + $0x80] sm:$0xff]
    %v175 = vld [vmem:[#allocation5 + $0x88] sm:$0xff]
    %v176 = vld [vmem:[#allocation5 + $0x90] sm:$0xff]
    %v177 = vld [vmem:[#allocation5 + $0x98] sm:$0xff]
    %v178 = vld [vmem:[#allocation5 + $0xa0] sm:$0xff]
    %v179 = vld [vmem:[#allocation5 + $0xa8] sm:$0xff]
    %v180 = vld [vmem:[#allocation5 + $0xb0] sm:$0xff]
    %v181 = vld [vmem:[#allocation5 + $0xb8] sm:$0xff]
    %v182 = vld [vmem:[#allocation5 + $0xc0] sm:$0xff]
    %v183 = vld [vmem:[#allocation5 + $0xc8] sm:$0xff]
    %v184 = vld [vmem:[#allocation5 + $0xd0] sm:$0xff]
    %v185 = vld [vmem:[#allocation5 + $0xd8] sm:$0xff]
    %v186 = vld [vmem:[#allocation5 + $0xe0] sm:$0xff]
    %v187 = vld [vmem:[#allocation5 + $0xe8] sm:$0xff]
    %v188 = vld [vmem:[#allocation5 + $0xf0] sm:$0xff]
    %v189 = vld [vmem:[#allocation5 + $0xf8] sm:$0xff]
    %v190 = vld [vmem:[#allocation5 + $0x100] sm:$0xff]
    %v191 = vld [vmem:[#allocation5 + $0x108] sm:$0xff]
    %v192 = vld [vmem:[#allocation5 + $0x110] sm:$0xff]
    %v193 = vld [vmem:[#allocation5 + $0x118] sm:$0xff]
    %v194 = vld [vmem:[#allocation5 + $0x120] sm:$0xff]
    %v195 = vld [vmem:[#allocation5 + $0x128] sm:$0xff]
    %v196 = vld [vmem:[#allocation5 + $0x130] sm:$0xff]
    %v197 = vld [vmem:[#allocation5 + $0x138] sm:$0xff]
    %v198 = vld [vmem:[#allocation5 + $0x140] sm:$0xff]
    %v199 = vld [vmem:[#allocation5 + $0x148] sm:$0xff]
    %v200 = vld [vmem:[#allocation5 + $0x150] sm:$0xff]
    %v201 = vld [vmem:[#allocation5 + $0x158] sm:$0xff]
    %v202 = vld [vmem:[#allocation5 + $0x160] sm:$0xff]
    %v203 = vld [vmem:[#allocation5 + $0x168] sm:$0xff]
    %v204 = vld [vmem:[#allocation5 + $0x170] sm:$0xff]
    %v205 = vld [vmem:[#allocation5 + $0x178] sm:$0xff]
    %v206 = vld [vmem:[#allocation5 + $0x180] sm:$0xff]
    %v207 = vld [vmem:[#allocation5 + $0x188] sm:$0xff]
    %v208 = vld [vmem:[#allocation5 + $0x190] sm:$0xff]
    %v209 = vld [vmem:[#allocation5 + $0x198] sm:$0xff]
    %v210 = vld [vmem:[#allocation5 + $0x1a0] sm:$0xff]
    %v211 = vld [vmem:[#allocation5 + $0x1a8] sm:$0xff]
    %v212 = vld [vmem:[#allocation5 + $0x1b0] sm:$0xff]
    %v213 = vld [vmem:[#allocation5 + $0x1b8] sm:$0xff]
    %v214 = vld [vmem:[#allocation5 + $0x1c0] sm:$0xff]
    %v215 = vld [vmem:[#allocation5 + $0x1c8] sm:$0xff]
    %v216 = vld [vmem:[#allocation5 + $0x1d0] sm:$0xff]
    %v217 = vld [vmem:[#allocation5 + $0x1d8] sm:$0xff]
    %v218 = vld [vmem:[#allocation5 + $0x1e0] sm:$0xff]
    %v219 = vld [vmem:[#allocation5 + $0x1e8] sm:$0xff]
    %v220 = vld [vmem:[#allocation5 + $0x1f0] sm:$0xff]
    %v221 = vld [vmem:[#allocation5 + $0x1f8] sm:$0xff]
    %v222 = vld [vmem:[#allocation5 + $0x200] sm:$0xff]
    %v223 = vld [vmem:[#allocation5 + $0x208] sm:$0xff]
    %v224 = vld [vmem:[#allocation5 + $0x210] sm:$0xff]
    %v225 = vld [vmem:[#allocation5 + $0x218] sm:$0xff]
    %v226 = vld [vmem:[#allocation5 + $0x220] sm:$0xff]
    %v227 = vld [vmem:[#allocation5 + $0x228] sm:$0xff]
    %v228 = vld [vmem:[#allocation5 + $0x230] sm:$0xff]
    %v229 = vld [vmem:[#allocation5 + $0x238] sm:$0xff]
    %v230 = vld [vmem:[#allocation5 + $0x240] sm:$0xff]
    %v231 = vld [vmem:[#allocation5 + $0x248] sm:$0xff]
    %v232 = vld [vmem:[#allocation5 + $0x250] sm:$0xff]
    %v233 = vld [vmem:[#allocation5 + $0x258] sm:$0xff]
    %v234 = vld [vmem:[#allocation5 + $0x260] sm:$0xff]
    %v235 = vld [vmem:[#allocation5 + $0x268] sm:$0xff]
    %v236 = vld [vmem:[#allocation5 + $0x270] sm:$0xff]
    %v237 = vld [vmem:[#allocation5 + $0x278] sm:$0xff]
    %v238 = vld [vmem:[#allocation5 + $0x280] sm:$0xff]
    %v239 = vld [vmem:[#allocation5 + $0x288] sm:$0xff]
    %v240 = vld [vmem:[#allocation5 + $0x290] sm:$0xff]
    %v241 = vld [vmem:[#allocation5 + $0x298] sm:$0xff]
    %v242 = vld [vmem:[#allocation5 + $0x2a0] sm:$0xff]
    %v243 = vld [vmem:[#allocation5 + $0x2a8] sm:$0xff]
    %v244 = vld [vmem:[#allocation5 + $0x2b0] sm:$0xff]
    %v245 = vld [vmem:[#allocation5 + $0x2b8] sm:$0xff]
    %v246 = vld [vmem:[#allocation5 + $0x2c0] sm:$0xff]
    %v247 = vld [vmem:[#allocation5 + $0x2c8] sm:$0xff]
    %v248 = vld [vmem:[#allocation5 + $0x2d0] sm:$0xff]
    %v249 = vld [vmem:[#allocation5 + $0x2d8] sm:$0xff]
    %v250 = vld [vmem:[#allocation5 + $0x2e0] sm:$0xff]
    %v251 = vld [vmem:[#allocation5 + $0x2e8] sm:$0xff]
    %v252 = vld [vmem:[#allocation5 + $0x2f0] sm:$0xff]
    %v253 = vld [vmem:[#allocation5 + $0x2f8] sm:$0xff]
    %v254 = vld [vmem:[#allocation5 + $0x300] sm:$0xff]
    %v255 = vld [vmem:[#allocation5 + $0x308] sm:$0xff]
    %v256 = vld [vmem:[#allocation5 + $0x310] sm:$0xff]
    %v257 = vld [vmem:[#allocation5 + $0x318] sm:$0xff]
    %v258 = vld [vmem:[#allocation5 + $0x320] sm:$0xff]
    %v259 = vld [vmem:[#allocation5 + $0x328] sm:$0xff]
    %v260 = vld [vmem:[#allocation5 + $0x330] sm:$0xff]
    %v261 = vld [vmem:[#allocation5 + $0x338] sm:$0xff]
    %v262 = vld [vmem:[#allocation5 + $0x340] sm:$0xff]
    %v263 = vld [vmem:[#allocation5 + $0x348] sm:$0xff]
    %v264 = vld [vmem:[#allocation5 + $0x350] sm:$0xff]
    %v265 = vld [vmem:[#allocation5 + $0x358] sm:$0xff]
    %v266 = vld [vmem:[#allocation5 + $0x360] sm:$0xff]
    %v267 = vld [vmem:[#allocation5 + $0x368] sm:$0xff]
    %v268 = vld [vmem:[#allocation5 + $0x370] sm:$0xff]
    %v269 = vld [vmem:[#allocation5 + $0x378] sm:$0xff]
    %v270 = vld [vmem:[#allocation5 + $0x380] sm:$0xff]
    %v271 = vld [vmem:[#allocation5 + $0x388] sm:$0xff]
    %v272 = vld [vmem:[#allocation5 + $0x390] sm:$0xff]
    %v273 = vld [vmem:[#allocation5 + $0x398] sm:$0xff]
    %v274 = vld [vmem:[#allocation5 + $0x3a0] sm:$0xff]
    %v275 = vld [vmem:[#allocation5 + $0x3a8] sm:$0xff]
    %v276 = vld [vmem:[#allocation5 + $0x3b0] sm:$0xff]
    %v277 = vld [vmem:[#allocation5 + $0x3b8] sm:$0xff]
    %v278 = vld [vmem:[#allocation5 + $0x3c0] sm:$0xff]
    %v279 = vld [vmem:[#allocation5 + $0x3c8] sm:$0xff]
    %v280 = vld [vmem:[#allocation5 + $0x3d0] sm:$0xff]
    %v281 = vld [vmem:[#allocation5 + $0x3d8] sm:$0xff]
    %v282 = vld [vmem:[#allocation5 + $0x3e0] sm:$0xff]
    %v283 = vld [vmem:[#allocation5 + $0x3e8] sm:$0xff]
    %v284 = vld [vmem:[#allocation5 + $0x3f0] sm:$0xff]
    %v285 = vld [vmem:[#allocation5 + $0x3f8] sm:$0xff]
    %v286 = vld [vmem:[#allocation5 + $0x400] sm:$0xff]
    %v287 = vld [vmem:[#allocation5 + $0x408] sm:$0xff]
    %v288 = vld [vmem:[#allocation5 + $0x410] sm:$0xff]
    %v289 = vld [vmem:[#allocation5 + $0x418] sm:$0xff]
    %v290 = vld [vmem:[#allocation5 + $0x420] sm:$0xff]
    %v291 = vld [vmem:[#allocation5 + $0x428] sm:$0xff]
    %v292 = vld [vmem:[#allocation5 + $0x430] sm:$0xff]
    %v293 = vld [vmem:[#allocation5 + $0x438] sm:$0xff]
    %v294 = vld [vmem:[#allocation5 + $0x440] sm:$0xff]
    %v295 = vld [vmem:[#allocation5 + $0x448] sm:$0xff]
    %v296 = vld [vmem:[#allocation5 + $0x450] sm:$0xff]
    %v297 = vld [vmem:[#allocation5 + $0x458] sm:$0xff]
    %v298 = vld [vmem:[#allocation5 + $0x460] sm:$0xff]
    %v299 = vld [vmem:[#allocation5 + $0x468] sm:$0xff]
    %v300 = vld [vmem:[#allocation5 + $0x470] sm:$0xff]
    %v301 = vld [vmem:[#allocation5 + $0x478] sm:$0xff]
    %v302 = vld [vmem:[#allocation5 + $0x480] sm:$0xff]
    %v303 = vld [vmem:[#allocation5 + $0x488] sm:$0xff]
    %v304 = vld [vmem:[#allocation5 + $0x490] sm:$0xff]
    %v305 = vld [vmem:[#allocation5 + $0x498] sm:$0xff]
    %v306 = vld [vmem:[#allocation5 + $0x4a0] sm:$0xff]
    %v307 = vld [vmem:[#allocation5 + $0x4a8] sm:$0xff]
    %v308 = vld [vmem:[#allocation5 + $0x4b0] sm:$0xff]
    %v309 = vld [vmem:[#allocation5 + $0x4b8] sm:$0xff]
    %v310 = vld [vmem:[#allocation5 + $0x4c0] sm:$0xff]
    %v311 = vld [vmem:[#allocation5 + $0x4c8] sm:$0xff]
    %v312 = vld [vmem:[#allocation5 + $0x4d0] sm:$0xff]
    %v313 = vld [vmem:[#allocation5 + $0x4d8] sm:$0xff]
    %v314 = vld [vmem:[#allocation5 + $0x4e0] sm:$0xff]
    %v315 = vld [vmem:[#allocation5 + $0x4e8] sm:$0xff]
    %v316 = vld [vmem:[#allocation5 + $0x4f0] sm:$0xff]
    %v317 = vld [vmem:[#allocation5 + $0x4f8] sm:$0xff]
    %v318 = vld [vmem:[#allocation5 + $0x500] sm:$0xff]
    %v319 = vld [vmem:[#allocation5 + $0x508] sm:$0xff]
    %v320 = vld [vmem:[#allocation5 + $0x510] sm:$0xff]
    %v321 = vld [vmem:[#allocation5 + $0x518] sm:$0xff]
    %v322 = vld [vmem:[#allocation5 + $0x520] sm:$0xff]
    %v323 = vld [vmem:[#allocation5 + $0x528] sm:$0xff]
    %v324 = vld [vmem:[#allocation5 + $0x530] sm:$0xff]
    %v325 = vld [vmem:[#allocation5 + $0x538] sm:$0xff]
    %v326 = vld [vmem:[#allocation5 + $0x540] sm:$0xff]
    %v327 = vld [vmem:[#allocation5 + $0x548] sm:$0xff]
    %v328 = vld [vmem:[#allocation5 + $0x550] sm:$0xff]
    %v329 = vld [vmem:[#allocation5 + $0x558] sm:$0xff]
    %v330 = vld [vmem:[#allocation5 + $0x560] sm:$0xff]
    %v331 = vld [vmem:[#allocation5 + $0x568] sm:$0xff]
    %v332 = vld [vmem:[#allocation5 + $0x570] sm:$0xff]
    %v333 = vld [vmem:[#allocation5 + $0x578] sm:$0xff]
    %v334 = vld [vmem:[#allocation5 + $0x580] sm:$0xff]
    %v335 = vld [vmem:[#allocation5 + $0x588] sm:$0xff]
    %v336 = vld [vmem:[#allocation5 + $0x590] sm:$0xff]
    %v337 = vld [vmem:[#allocation5 + $0x598] sm:$0xff]
    %v338 = vld [vmem:[#allocation5 + $0x5a0] sm:$0xff]
    %v339 = vld [vmem:[#allocation5 + $0x5a8] sm:$0xff]
    %v340 = vld [vmem:[#allocation5 + $0x5b0] sm:$0xff]
    %v341 = vld [vmem:[#allocation5 + $0x5b8] sm:$0xff]
    %v342 = vld [vmem:[#allocation5 + $0x5c0] sm:$0xff]
    %v343 = vld [vmem:[#allocation5 + $0x5c8] sm:$0xff]
    %v344 = vld [vmem:[#allocation5 + $0x5d0] sm:$0xff]
    %v345 = vld [vmem:[#allocation5 + $0x5d8] sm:$0xff]
    %v346 = vld [vmem:[#allocation5 + $0x5e0] sm:$0xff]
    %v347 = vld [vmem:[#allocation5 + $0x5e8] sm:$0xff]
    %v348 = vld [vmem:[#allocation5 + $0x5f0] sm:$0xff]
    %v349 = vld [vmem:[#allocation5 + $0x5f8] sm:$0xff]
    %v350 = vld [vmem:[#allocation7] sm:$0xf]
    %v352 = vlaneseq
    %v353 = vshrl.u32 %v352, 7
    %v354 = vsub.s32 0, %v353
    %v355 = vrot.slane %v350, %v354
    %v356 = vlaneseq
    %v357 = vshrl.u32 %v356, 7
    %v358 = vsub.s32 1, %v357
    %v359 = vrot.slane %v350, %v358
    %v360 = vlaneseq
    %v361 = vshrl.u32 %v360, 7
    %v362 = vsub.s32 2, %v361
    %v363 = vrot.slane %v350, %v362
    %v364 = vlaneseq
    %v365 = vshrl.u32 %v364, 7
    %v366 = vsub.s32 3, %v365
    %v367 = vrot.slane %v350, %v366
    %v564 = vunpack.c.l.b16 %v158
    %v565 = vunpack.c.h.b16 %v158
    %v566 = vunpack.c.l.b16 %v159
    %v567 = vunpack.c.h.b16 %v159
    %v568 = vunpack.c.l.b16 %v160
    %v569 = vunpack.c.h.b16 %v160
    %v570 = vunpack.c.l.b16 %v161
    %v571 = vunpack.c.h.b16 %v161
    %v572 = vunpack.c.l.b16 %v162
    %v573 = vunpack.c.h.b16 %v162
    %v574 = vunpack.c.l.b16 %v163
    %v575 = vunpack.c.h.b16 %v163
    %v576 = vunpack.c.l.b16 %v164
    %v577 = vunpack.c.h.b16 %v164
    %v578 = vunpack.c.l.b16 %v165
    %v579 = vunpack.c.h.b16 %v165
    %v580 = vunpack.c.l.b16 %v166
    %v581 = vunpack.c.h.b16 %v166
    %v582 = vunpack.c.l.b16 %v167
    %v583 = vunpack.c.h.b16 %v167
    %v584 = vunpack.c.l.b16 %v168
    %v585 = vunpack.c.h.b16 %v168
    %v586 = vunpack.c.l.b16 %v169
    %v587 = vunpack.c.h.b16 %v169
    %v588 = vunpack.c.l.b16 %v170
    %v589 = vunpack.c.h.b16 %v170
    %v590 = vunpack.c.l.b16 %v171
    %v591 = vunpack.c.h.b16 %v171
    %v592 = vunpack.c.l.b16 %v172
    %v593 = vunpack.c.h.b16 %v172
    %v594 = vunpack.c.l.b16 %v173
    %v595 = vunpack.c.h.b16 %v173
    %v596 = vunpack.c.l.b16 %v174
    %v597 = vunpack.c.h.b16 %v174
    %v598 = vunpack.c.l.b16 %v175
    %v599 = vunpack.c.h.b16 %v175
    %v600 = vunpack.c.l.b16 %v176
    %v601 = vunpack.c.h.b16 %v176
    %v602 = vunpack.c.l.b16 %v177
    %v603 = vunpack.c.h.b16 %v177
    %v604 = vunpack.c.l.b16 %v178
    %v605 = vunpack.c.h.b16 %v178
    %v606 = vunpack.c.l.b16 %v179
    %v607 = vunpack.c.h.b16 %v179
    %v608 = vunpack.c.l.b16 %v180
    %v609 = vunpack.c.h.b16 %v180
    %v610 = vunpack.c.l.b16 %v181
    %v611 = vunpack.c.h.b16 %v181
    %v612 = vunpack.c.l.b16 %v182
    %v613 = vunpack.c.h.b16 %v182
    %v614 = vunpack.c.l.b16 %v183
    %v615 = vunpack.c.h.b16 %v183
    %v616 = vunpack.c.l.b16 %v184
    %v617 = vunpack.c.h.b16 %v184
    %v618 = vunpack.c.l.b16 %v185
    %v619 = vunpack.c.h.b16 %v185
    %v620 = vunpack.c.l.b16 %v186
    %v621 = vunpack.c.h.b16 %v186
    %v622 = vunpack.c.l.b16 %v187
    %v623 = vunpack.c.h.b16 %v187
    %v624 = vunpack.c.l.b16 %v188
    %v625 = vunpack.c.h.b16 %v188
    %v626 = vunpack.c.l.b16 %v189
    %v627 = vunpack.c.h.b16 %v189
    %v628 = vunpack.c.l.b16 %v190
    %v629 = vunpack.c.h.b16 %v190
    %v630 = vunpack.c.l.b16 %v191
    %v631 = vunpack.c.h.b16 %v191
    %v632 = vunpack.c.l.b16 %v192
    %v633 = vunpack.c.h.b16 %v192
    %v634 = vunpack.c.l.b16 %v193
    %v635 = vunpack.c.h.b16 %v193
    %v636 = vunpack.c.l.b16 %v194
    %v637 = vunpack.c.h.b16 %v194
    %v638 = vunpack.c.l.b16 %v195
    %v639 = vunpack.c.h.b16 %v195
    %v640 = vunpack.c.l.b16 %v196
    %v641 = vunpack.c.h.b16 %v196
    %v642 = vunpack.c.l.b16 %v197
    %v643 = vunpack.c.h.b16 %v197
    %v644 = vunpack.c.l.b16 %v198
    %v645 = vunpack.c.h.b16 %v198
    %v646 = vunpack.c.l.b16 %v199
    %v647 = vunpack.c.h.b16 %v199
    %v648 = vunpack.c.l.b16 %v200
    %v649 = vunpack.c.h.b16 %v200
    %v650 = vunpack.c.l.b16 %v201
    %v651 = vunpack.c.h.b16 %v201
    %v652 = vunpack.c.l.b16 %v202
    %v653 = vunpack.c.h.b16 %v202
    %v654 = vunpack.c.l.b16 %v203
    %v655 = vunpack.c.h.b16 %v203
    %v656 = vunpack.c.l.b16 %v204
    %v657 = vunpack.c.h.b16 %v204
    %v658 = vunpack.c.l.b16 %v205
    %v659 = vunpack.c.h.b16 %v205
    %v660 = vunpack.c.l.b16 %v206
    %v661 = vunpack.c.h.b16 %v206
    %v662 = vunpack.c.l.b16 %v207
    %v663 = vunpack.c.h.b16 %v207
    %v664 = vunpack.c.l.b16 %v208
    %v665 = vunpack.c.h.b16 %v208
    %v666 = vunpack.c.l.b16 %v209
    %v667 = vunpack.c.h.b16 %v209
    %v668 = vunpack.c.l.b16 %v210
    %v669 = vunpack.c.h.b16 %v210
    %v670 = vunpack.c.l.b16 %v211
    %v671 = vunpack.c.h.b16 %v211
    %v672 = vunpack.c.l.b16 %v212
    %v673 = vunpack.c.h.b16 %v212
    %v674 = vunpack.c.l.b16 %v213
    %v675 = vunpack.c.h.b16 %v213
    %v676 = vunpack.c.l.b16 %v214
    %v677 = vunpack.c.h.b16 %v214
    %v678 = vunpack.c.l.b16 %v215
    %v679 = vunpack.c.h.b16 %v215
    %v680 = vunpack.c.l.b16 %v216
    %v681 = vunpack.c.h.b16 %v216
    %v682 = vunpack.c.l.b16 %v217
    %v683 = vunpack.c.h.b16 %v217
    %v684 = vunpack.c.l.b16 %v218
    %v685 = vunpack.c.h.b16 %v218
    %v686 = vunpack.c.l.b16 %v219
    %v687 = vunpack.c.h.b16 %v219
    %v688 = vunpack.c.l.b16 %v220
    %v689 = vunpack.c.h.b16 %v220
    %v690 = vunpack.c.l.b16 %v221
    %v691 = vunpack.c.h.b16 %v221
    %v692 = vunpack.c.l.b16 %v222
    %v693 = vunpack.c.h.b16 %v222
    %v694 = vunpack.c.l.b16 %v223
    %v695 = vunpack.c.h.b16 %v223
    %v696 = vunpack.c.l.b16 %v224
    %v697 = vunpack.c.h.b16 %v224
    %v698 = vunpack.c.l.b16 %v225
    %v699 = vunpack.c.h.b16 %v225
    %v700 = vunpack.c.l.b16 %v226
    %v701 = vunpack.c.h.b16 %v226
    %v702 = vunpack.c.l.b16 %v227
    %v703 = vunpack.c.h.b16 %v227
    %v704 = vunpack.c.l.b16 %v228
    %v705 = vunpack.c.h.b16 %v228
    %v706 = vunpack.c.l.b16 %v229
    %v707 = vunpack.c.h.b16 %v229
    %v708 = vunpack.c.l.b16 %v230
    %v709 = vunpack.c.h.b16 %v230
    %v710 = vunpack.c.l.b16 %v231
    %v711 = vunpack.c.h.b16 %v231
    %v712 = vunpack.c.l.b16 %v232
    %v713 = vunpack.c.h.b16 %v232
    %v714 = vunpack.c.l.b16 %v233
    %v715 = vunpack.c.h.b16 %v233
    %v716 = vunpack.c.l.b16 %v234
    %v717 = vunpack.c.h.b16 %v234
    %v718 = vunpack.c.l.b16 %v235
    %v719 = vunpack.c.h.b16 %v235
    %v720 = vunpack.c.l.b16 %v236
    %v721 = vunpack.c.h.b16 %v236
    %v722 = vunpack.c.l.b16 %v237
    %v723 = vunpack.c.h.b16 %v237
    %v724 = vunpack.c.l.b16 %v238
    %v725 = vunpack.c.h.b16 %v238
    %v726 = vunpack.c.l.b16 %v239
    %v727 = vunpack.c.h.b16 %v239
    %v728 = vunpack.c.l.b16 %v240
    %v729 = vunpack.c.h.b16 %v240
    %v730 = vunpack.c.l.b16 %v241
    %v731 = vunpack.c.h.b16 %v241
    %v732 = vunpack.c.l.b16 %v242
    %v733 = vunpack.c.h.b16 %v242
    %v734 = vunpack.c.l.b16 %v243
    %v735 = vunpack.c.h.b16 %v243
    %v736 = vunpack.c.l.b16 %v244
    %v737 = vunpack.c.h.b16 %v244
    %v738 = vunpack.c.l.b16 %v245
    %v739 = vunpack.c.h.b16 %v245
    %v740 = vunpack.c.l.b16 %v246
    %v741 = vunpack.c.h.b16 %v246
    %v742 = vunpack.c.l.b16 %v247
    %v743 = vunpack.c.h.b16 %v247
    %v744 = vunpack.c.l.b16 %v248
    %v745 = vunpack.c.h.b16 %v248
    %v746 = vunpack.c.l.b16 %v249
    %v747 = vunpack.c.h.b16 %v249
    %v748 = vunpack.c.l.b16 %v250
    %v749 = vunpack.c.h.b16 %v250
    %v750 = vunpack.c.l.b16 %v251
    %v751 = vunpack.c.h.b16 %v251
    %v752 = vunpack.c.l.b16 %v252
    %v753 = vunpack.c.h.b16 %v252
    %v754 = vunpack.c.l.b16 %v253
    %v755 = vunpack.c.h.b16 %v253
    %v756 = vunpack.c.l.b16 %v254
    %v757 = vunpack.c.h.b16 %v254
    %v758 = vunpack.c.l.b16 %v255
    %v759 = vunpack.c.h.b16 %v255
    %v760 = vunpack.c.l.b16 %v256
    %v761 = vunpack.c.h.b16 %v256
    %v762 = vunpack.c.l.b16 %v257
    %v763 = vunpack.c.h.b16 %v257
    %v764 = vunpack.c.l.b16 %v258
    %v765 = vunpack.c.h.b16 %v258
    %v766 = vunpack.c.l.b16 %v259
    %v767 = vunpack.c.h.b16 %v259
    %v768 = vunpack.c.l.b16 %v260
    %v769 = vunpack.c.h.b16 %v260
    %v770 = vunpack.c.l.b16 %v261
    %v771 = vunpack.c.h.b16 %v261
    %v772 = vunpack.c.l.b16 %v262
    %v773 = vunpack.c.h.b16 %v262
    %v774 = vunpack.c.l.b16 %v263
    %v775 = vunpack.c.h.b16 %v263
    %v776 = vunpack.c.l.b16 %v264
    %v777 = vunpack.c.h.b16 %v264
    %v778 = vunpack.c.l.b16 %v265
    %v779 = vunpack.c.h.b16 %v265
    %v780 = vunpack.c.l.b16 %v266
    %v781 = vunpack.c.h.b16 %v266
    %v782 = vunpack.c.l.b16 %v267
    %v783 = vunpack.c.h.b16 %v267
    %v784 = vunpack.c.l.b16 %v268
    %v785 = vunpack.c.h.b16 %v268
    %v786 = vunpack.c.l.b16 %v269
    %v787 = vunpack.c.h.b16 %v269
    %v788 = vunpack.c.l.b16 %v270
    %v789 = vunpack.c.h.b16 %v270
    %v790 = vunpack.c.l.b16 %v271
    %v791 = vunpack.c.h.b16 %v271
    %v792 = vunpack.c.l.b16 %v272
    %v793 = vunpack.c.h.b16 %v272
    %v794 = vunpack.c.l.b16 %v273
    %v795 = vunpack.c.h.b16 %v273
    %v796 = vunpack.c.l.b16 %v274
    %v797 = vunpack.c.h.b16 %v274
    %v798 = vunpack.c.l.b16 %v275
    %v799 = vunpack.c.h.b16 %v275
    %v800 = vunpack.c.l.b16 %v276
    %v801 = vunpack.c.h.b16 %v276
    %v802 = vunpack.c.l.b16 %v277
    %v803 = vunpack.c.h.b16 %v277
    %v804 = vunpack.c.l.b16 %v278
    %v805 = vunpack.c.h.b16 %v278
    %v806 = vunpack.c.l.b16 %v279
    %v807 = vunpack.c.h.b16 %v279
    %v808 = vunpack.c.l.b16 %v280
    %v809 = vunpack.c.h.b16 %v280
    %v810 = vunpack.c.l.b16 %v281
    %v811 = vunpack.c.h.b16 %v281
    %v812 = vunpack.c.l.b16 %v282
    %v813 = vunpack.c.h.b16 %v282
    %v814 = vunpack.c.l.b16 %v283
    %v815 = vunpack.c.h.b16 %v283
    %v816 = vunpack.c.l.b16 %v284
    %v817 = vunpack.c.h.b16 %v284
    %v818 = vunpack.c.l.b16 %v285
    %v819 = vunpack.c.h.b16 %v285
    %v820 = vunpack.c.l.b16 %v286
    %v821 = vunpack.c.h.b16 %v286
    %v822 = vunpack.c.l.b16 %v287
    %v823 = vunpack.c.h.b16 %v287
    %v824 = vunpack.c.l.b16 %v288
    %v825 = vunpack.c.h.b16 %v288
    %v826 = vunpack.c.l.b16 %v289
    %v827 = vunpack.c.h.b16 %v289
    %v828 = vunpack.c.l.b16 %v290
    %v829 = vunpack.c.h.b16 %v290
    %v830 = vunpack.c.l.b16 %v291
    %v831 = vunpack.c.h.b16 %v291
    %v832 = vunpack.c.l.b16 %v292
    %v833 = vunpack.c.h.b16 %v292
    %v834 = vunpack.c.l.b16 %v293
    %v835 = vunpack.c.h.b16 %v293
    %v836 = vunpack.c.l.b16 %v294
    %v837 = vunpack.c.h.b16 %v294
    %v838 = vunpack.c.l.b16 %v295
    %v839 = vunpack.c.h.b16 %v295
    %v840 = vunpack.c.l.b16 %v296
    %v841 = vunpack.c.h.b16 %v296
    %v842 = vunpack.c.l.b16 %v297
    %v843 = vunpack.c.h.b16 %v297
    %v844 = vunpack.c.l.b16 %v298
    %v845 = vunpack.c.h.b16 %v298
    %v846 = vunpack.c.l.b16 %v299
    %v847 = vunpack.c.h.b16 %v299
    %v848 = vunpack.c.l.b16 %v300
    %v849 = vunpack.c.h.b16 %v300
    %v850 = vunpack.c.l.b16 %v301
    %v851 = vunpack.c.h.b16 %v301
    %v852 = vunpack.c.l.b16 %v302
    %v853 = vunpack.c.h.b16 %v302
    %v854 = vunpack.c.l.b16 %v303
    %v855 = vunpack.c.h.b16 %v303
    %v856 = vunpack.c.l.b16 %v304
    %v857 = vunpack.c.h.b16 %v304
    %v858 = vunpack.c.l.b16 %v305
    %v859 = vunpack.c.h.b16 %v305
    %v860 = vunpack.c.l.b16 %v306
    %v861 = vunpack.c.h.b16 %v306
    %v862 = vunpack.c.l.b16 %v307
    %v863 = vunpack.c.h.b16 %v307
    %v864 = vunpack.c.l.b16 %v308
    %v865 = vunpack.c.h.b16 %v308
    %v866 = vunpack.c.l.b16 %v309
    %v867 = vunpack.c.h.b16 %v309
    %v868 = vunpack.c.l.b16 %v310
    %v869 = vunpack.c.h.b16 %v310
    %v870 = vunpack.c.l.b16 %v311
    %v871 = vunpack.c.h.b16 %v311
    %v872 = vunpack.c.l.b16 %v312
    %v873 = vunpack.c.h.b16 %v312
    %v874 = vunpack.c.l.b16 %v313
    %v875 = vunpack.c.h.b16 %v313
    %v876 = vunpack.c.l.b16 %v314
    %v877 = vunpack.c.h.b16 %v314
    %v878 = vunpack.c.l.b16 %v315
    %v879 = vunpack.c.h.b16 %v315
    %v880 = vunpack.c.l.b16 %v316
    %v881 = vunpack.c.h.b16 %v316
    %v882 = vunpack.c.l.b16 %v317
    %v883 = vunpack.c.h.b16 %v317
    %v884 = vunpack.c.l.b16 %v318
    %v885 = vunpack.c.h.b16 %v318
    %v886 = vunpack.c.l.b16 %v319
    %v887 = vunpack.c.h.b16 %v319
    %v888 = vunpack.c.l.b16 %v320
    %v889 = vunpack.c.h.b16 %v320
    %v890 = vunpack.c.l.b16 %v321
    %v891 = vunpack.c.h.b16 %v321
    %v892 = vunpack.c.l.b16 %v322
    %v893 = vunpack.c.h.b16 %v322
    %v894 = vunpack.c.l.b16 %v323
    %v895 = vunpack.c.h.b16 %v323
    %v896 = vunpack.c.l.b16 %v324
    %v897 = vunpack.c.h.b16 %v324
    %v898 = vunpack.c.l.b16 %v325
    %v899 = vunpack.c.h.b16 %v325
    %v900 = vunpack.c.l.b16 %v326
    %v901 = vunpack.c.h.b16 %v326
    %v902 = vunpack.c.l.b16 %v327
    %v903 = vunpack.c.h.b16 %v327
    %v904 = vunpack.c.l.b16 %v328
    %v905 = vunpack.c.h.b16 %v328
    %v906 = vunpack.c.l.b16 %v329
    %v907 = vunpack.c.h.b16 %v329
    %v908 = vunpack.c.l.b16 %v330
    %v909 = vunpack.c.h.b16 %v330
    %v910 = vunpack.c.l.b16 %v331
    %v911 = vunpack.c.h.b16 %v331
    %v912 = vunpack.c.l.b16 %v332
    %v913 = vunpack.c.h.b16 %v332
    %v914 = vunpack.c.l.b16 %v333
    %v915 = vunpack.c.h.b16 %v333
    %v916 = vunpack.c.l.b16 %v334
    %v917 = vunpack.c.h.b16 %v334
    %v918 = vunpack.c.l.b16 %v335
    %v919 = vunpack.c.h.b16 %v335
    %v920 = vunpack.c.l.b16 %v336
    %v921 = vunpack.c.h.b16 %v336
    %v922 = vunpack.c.l.b16 %v337
    %v923 = vunpack.c.h.b16 %v337
    %v924 = vunpack.c.l.b16 %v338
    %v925 = vunpack.c.h.b16 %v338
    %v926 = vunpack.c.l.b16 %v339
    %v927 = vunpack.c.h.b16 %v339
    %v928 = vunpack.c.l.b16 %v340
    %v929 = vunpack.c.h.b16 %v340
    %v930 = vunpack.c.l.b16 %v341
    %v931 = vunpack.c.h.b16 %v341
    %v932 = vunpack.c.l.b16 %v342
    %v933 = vunpack.c.h.b16 %v342
    %v934 = vunpack.c.l.b16 %v343
    %v935 = vunpack.c.h.b16 %v343
    %v936 = vunpack.c.l.b16 %v344
    %v937 = vunpack.c.h.b16 %v344
    %v938 = vunpack.c.l.b16 %v345
    %v939 = vunpack.c.h.b16 %v345
    %v940 = vunpack.c.l.b16 %v346
    %v941 = vunpack.c.h.b16 %v346
    %v942 = vunpack.c.l.b16 %v347
    %v943 = vunpack.c.h.b16 %v347
    %v944 = vunpack.c.l.b16 %v348
    %v945 = vunpack.c.h.b16 %v348
    %v946 = vunpack.c.l.b16 %v349
    %v947 = vunpack.c.h.b16 %v349
    %v948 = vpack.c.b16 %v568, %v564
    %v949 = vpack.c.b16 %v569, %v565
    %v950 = vpack.c.b16 %v570, %v566
    %v951 = vpack.c.b16 %v571, %v567
    %v952 = vpack.c.b16 %v576, %v572
    %v953 = vpack.c.b16 %v577, %v573
    %v954 = vpack.c.b16 %v578, %v574
    %v955 = vpack.c.b16 %v579, %v575
    %v956 = vpack.c.b16 %v584, %v580
    %v957 = vpack.c.b16 %v585, %v581
    %v958 = vpack.c.b16 %v586, %v582
    %v959 = vpack.c.b16 %v587, %v583
    %v960 = vpack.c.b16 %v592, %v588
    %v961 = vpack.c.b16 %v593, %v589
    %v962 = vpack.c.b16 %v594, %v590
    %v963 = vpack.c.b16 %v595, %v591
    %v964 = vpack.c.b16 %v600, %v596
    %v965 = vpack.c.b16 %v601, %v597
    %v966 = vpack.c.b16 %v602, %v598
    %v967 = vpack.c.b16 %v603, %v599
    %v968 = vpack.c.b16 %v608, %v604
    %v969 = vpack.c.b16 %v609, %v605
    %v970 = vpack.c.b16 %v610, %v606
    %v971 = vpack.c.b16 %v611, %v607
    %v972 = vpack.c.b16 %v616, %v612
    %v973 = vpack.c.b16 %v617, %v613
    %v974 = vpack.c.b16 %v618, %v614
    %v975 = vpack.c.b16 %v619, %v615
    %v976 = vpack.c.b16 %v624, %v620
    %v977 = vpack.c.b16 %v625, %v621
    %v978 = vpack.c.b16 %v626, %v622
    %v979 = vpack.c.b16 %v627, %v623
    %v980 = vpack.c.b16 %v632, %v628
    %v981 = vpack.c.b16 %v633, %v629
    %v982 = vpack.c.b16 %v634, %v630
    %v983 = vpack.c.b16 %v635, %v631
    %v984 = vpack.c.b16 %v640, %v636
    %v985 = vpack.c.b16 %v641, %v637
    %v986 = vpack.c.b16 %v642, %v638
    %v987 = vpack.c.b16 %v643, %v639
    %v988 = vpack.c.b16 %v648, %v644
    %v989 = vpack.c.b16 %v649, %v645
    %v990 = vpack.c.b16 %v650, %v646
    %v991 = vpack.c.b16 %v651, %v647
    %v992 = vpack.c.b16 %v656, %v652
    %v993 = vpack.c.b16 %v657, %v653
    %v994 = vpack.c.b16 %v658, %v654
    %v995 = vpack.c.b16 %v659, %v655
    %v996 = vpack.c.b16 %v664, %v660
    %v997 = vpack.c.b16 %v665, %v661
    %v998 = vpack.c.b16 %v666, %v662
    %v999 = vpack.c.b16 %v667, %v663
    %v1000 = vpack.c.b16 %v672, %v668
    %v1001 = vpack.c.b16 %v673, %v669
    %v1002 = vpack.c.b16 %v674, %v670
    %v1003 = vpack.c.b16 %v675, %v671
    %v1004 = vpack.c.b16 %v680, %v676
    %v1005 = vpack.c.b16 %v681, %v677
    %v1006 = vpack.c.b16 %v682, %v678
    %v1007 = vpack.c.b16 %v683, %v679
    %v1008 = vpack.c.b16 %v688, %v684
    %v1009 = vpack.c.b16 %v689, %v685
    %v1010 = vpack.c.b16 %v690, %v686
    %v1011 = vpack.c.b16 %v691, %v687
    %v1012 = vpack.c.b16 %v696, %v692
    %v1013 = vpack.c.b16 %v697, %v693
    %v1014 = vpack.c.b16 %v698, %v694
    %v1015 = vpack.c.b16 %v699, %v695
    %v1016 = vpack.c.b16 %v704, %v700
    %v1017 = vpack.c.b16 %v705, %v701
    %v1018 = vpack.c.b16 %v706, %v702
    %v1019 = vpack.c.b16 %v707, %v703
    %v1020 = vpack.c.b16 %v712, %v708
    %v1021 = vpack.c.b16 %v713, %v709
    %v1022 = vpack.c.b16 %v714, %v710
    %v1023 = vpack.c.b16 %v715, %v711
    %v1024 = vpack.c.b16 %v720, %v716
    %v1025 = vpack.c.b16 %v721, %v717
    %v1026 = vpack.c.b16 %v722, %v718
    %v1027 = vpack.c.b16 %v723, %v719
    %v1028 = vpack.c.b16 %v728, %v724
    %v1029 = vpack.c.b16 %v729, %v725
    %v1030 = vpack.c.b16 %v730, %v726
    %v1031 = vpack.c.b16 %v731, %v727
    %v1032 = vpack.c.b16 %v736, %v732
    %v1033 = vpack.c.b16 %v737, %v733
    %v1034 = vpack.c.b16 %v738, %v734
    %v1035 = vpack.c.b16 %v739, %v735
    %v1036 = vpack.c.b16 %v744, %v740
    %v1037 = vpack.c.b16 %v745, %v741
    %v1038 = vpack.c.b16 %v746, %v742
    %v1039 = vpack.c.b16 %v747, %v743
    %v1040 = vpack.c.b16 %v752, %v748
    %v1041 = vpack.c.b16 %v753, %v749
    %v1042 = vpack.c.b16 %v754, %v750
    %v1043 = vpack.c.b16 %v755, %v751
    %v1044 = vpack.c.b16 %v760, %v756
    %v1045 = vpack.c.b16 %v761, %v757
    %v1046 = vpack.c.b16 %v762, %v758
    %v1047 = vpack.c.b16 %v763, %v759
    %v1048 = vpack.c.b16 %v768, %v764
    %v1049 = vpack.c.b16 %v769, %v765
    %v1050 = vpack.c.b16 %v770, %v766
    %v1051 = vpack.c.b16 %v771, %v767
    %v1052 = vpack.c.b16 %v776, %v772
    %v1053 = vpack.c.b16 %v777, %v773
    %v1054 = vpack.c.b16 %v778, %v774
    %v1055 = vpack.c.b16 %v779, %v775
    %v1056 = vpack.c.b16 %v784, %v780
    %v1057 = vpack.c.b16 %v785, %v781
    %v1058 = vpack.c.b16 %v786, %v782
    %v1059 = vpack.c.b16 %v787, %v783
    %v1060 = vpack.c.b16 %v792, %v788
    %v1061 = vpack.c.b16 %v793, %v789
    %v1062 = vpack.c.b16 %v794, %v790
    %v1063 = vpack.c.b16 %v795, %v791
    %v1064 = vpack.c.b16 %v800, %v796
    %v1065 = vpack.c.b16 %v801, %v797
    %v1066 = vpack.c.b16 %v802, %v798
    %v1067 = vpack.c.b16 %v803, %v799
    %v1068 = vpack.c.b16 %v808, %v804
    %v1069 = vpack.c.b16 %v809, %v805
    %v1070 = vpack.c.b16 %v810, %v806
    %v1071 = vpack.c.b16 %v811, %v807
    %v1072 = vpack.c.b16 %v816, %v812
    %v1073 = vpack.c.b16 %v817, %v813
    %v1074 = vpack.c.b16 %v818, %v814
    %v1075 = vpack.c.b16 %v819, %v815
    %v1076 = vpack.c.b16 %v824, %v820
    %v1077 = vpack.c.b16 %v825, %v821
    %v1078 = vpack.c.b16 %v826, %v822
    %v1079 = vpack.c.b16 %v827, %v823
    %v1080 = vpack.c.b16 %v832, %v828
    %v1081 = vpack.c.b16 %v833, %v829
    %v1082 = vpack.c.b16 %v834, %v830
    %v1083 = vpack.c.b16 %v835, %v831
    %v1084 = vpack.c.b16 %v840, %v836
    %v1085 = vpack.c.b16 %v841, %v837
    %v1086 = vpack.c.b16 %v842, %v838
    %v1087 = vpack.c.b16 %v843, %v839
    %v1088 = vpack.c.b16 %v848, %v844
    %v1089 = vpack.c.b16 %v849, %v845
    %v1090 = vpack.c.b16 %v850, %v846
    %v1091 = vpack.c.b16 %v851, %v847
    %v1092 = vpack.c.b16 %v856, %v852
    %v1093 = vpack.c.b16 %v857, %v853
    %v1094 = vpack.c.b16 %v858, %v854
    %v1095 = vpack.c.b16 %v859, %v855
    %v1096 = vpack.c.b16 %v864, %v860
    %v1097 = vpack.c.b16 %v865, %v861
    %v1098 = vpack.c.b16 %v866, %v862
    %v1099 = vpack.c.b16 %v867, %v863
    %v1100 = vpack.c.b16 %v872, %v868
    %v1101 = vpack.c.b16 %v873, %v869
    %v1102 = vpack.c.b16 %v874, %v870
    %v1103 = vpack.c.b16 %v875, %v871
    %v1104 = vpack.c.b16 %v880, %v876
    %v1105 = vpack.c.b16 %v881, %v877
    %v1106 = vpack.c.b16 %v882, %v878
    %v1107 = vpack.c.b16 %v883, %v879
    %v1108 = vpack.c.b16 %v888, %v884
    %v1109 = vpack.c.b16 %v889, %v885
    %v1110 = vpack.c.b16 %v890, %v886
    %v1111 = vpack.c.b16 %v891, %v887
    %v1112 = vpack.c.b16 %v896, %v892
    %v1113 = vpack.c.b16 %v897, %v893
    %v1114 = vpack.c.b16 %v898, %v894
    %v1115 = vpack.c.b16 %v899, %v895
    %v1116 = vpack.c.b16 %v904, %v900
    %v1117 = vpack.c.b16 %v905, %v901
    %v1118 = vpack.c.b16 %v906, %v902
    %v1119 = vpack.c.b16 %v907, %v903
    %v1120 = vpack.c.b16 %v912, %v908
    %v1121 = vpack.c.b16 %v913, %v909
    %v1122 = vpack.c.b16 %v914, %v910
    %v1123 = vpack.c.b16 %v915, %v911
    %v1124 = vpack.c.b16 %v920, %v916
    %v1125 = vpack.c.b16 %v921, %v917
    %v1126 = vpack.c.b16 %v922, %v918
    %v1127 = vpack.c.b16 %v923, %v919
    %v1128 = vpack.c.b16 %v928, %v924
    %v1129 = vpack.c.b16 %v929, %v925
    %v1130 = vpack.c.b16 %v930, %v926
    %v1131 = vpack.c.b16 %v931, %v927
    %v1132 = vpack.c.b16 %v936, %v932
    %v1133 = vpack.c.b16 %v937, %v933
    %v1134 = vpack.c.b16 %v938, %v934
    %v1135 = vpack.c.b16 %v939, %v935
    %v1136 = vpack.c.b16 %v944, %v940
    %v1137 = vpack.c.b16 %v945, %v941
    %v1138 = vpack.c.b16 %v946, %v942
    %v1139 = vpack.c.b16 %v947, %v943
    %1332 = vmatprep.subr.bf16.mxu0 %v949
    %1333 = vmatpush1.bf16.msra.mxu0 %v948
    %1334 = vmatprep.subr.bf16.mxu0 %v953
    %1335 = vmatpush1.bf16.msra.mxu0 %v952
    %1336 = vmatprep.subr.bf16.mxu0 %v957
    %1337 = vmatpush1.bf16.msra.mxu0 %v956
    %1338 = vmatprep.subr.bf16.mxu0 %v961
    %1339 = vmatpush1.bf16.msra.mxu0 %v960
    %1340 = vmatprep.subr.bf16.mxu0 %v965
    %1341 = vmatpush1.bf16.msra.mxu0 %v964
    %1342 = vmatprep.subr.bf16.mxu0 %v969
    %1343 = vmatpush1.bf16.msra.mxu0 %v968
    %1344 = vmatprep.subr.bf16.mxu0 %v973
    %1345 = vmatpush1.bf16.msra.mxu0 %v972
    %1346 = vmatprep.subr.bf16.mxu0 %v977
    %1347 = vmatpush1.bf16.msra.mxu0 %v976
    %1348 = vmatprep.subr.bf16.mxu0 %v981
    %1349 = vmatpush1.bf16.msra.mxu0 %v980
    %1350 = vmatprep.subr.bf16.mxu0 %v985
    %1351 = vmatpush1.bf16.msra.mxu0 %v984
    %1352 = vmatprep.subr.bf16.mxu0 %v989
    %1353 = vmatpush1.bf16.msra.mxu0 %v988
    %1354 = vmatprep.subr.bf16.mxu0 %v993
    %1355 = vmatpush1.bf16.msra.mxu0 %v992
    %1356 = vmatprep.subr.bf16.mxu0 %v997
    %1357 = vmatpush1.bf16.msra.mxu0 %v996
    %1358 = vmatprep.subr.bf16.mxu0 %v1001
    %1359 = vmatpush1.bf16.msra.mxu0 %v1000
    %1360 = vmatprep.subr.bf16.mxu0 %v1005
    %1361 = vmatpush1.bf16.msra.mxu0 %v1004
    %1362 = vmatprep.subr.bf16.mxu0 %v1009
    %1363 = vmatpush1.bf16.msra.mxu0 %v1008
    %1364 = vmatprep.mubr.bf16.mxu0 %v153
    %1365 = vmatmul.mubr.bf16.gmra.mrb[0].mxu0 %v152
    %v1366 = vpop.f32.mrb[0].mxu0
    %v1367 = vadd.f32 %v355, %v1366
    %v1368 = vpop.f32.mrb[0].mxu0
    %v1369 = vadd.f32 %v359, %v1368
    %v1370 = vpop.f32.mrb[0].mxu0
    %v1371 = vpop.f32.mrb[0].mxu0
    %1372 = vdwg.mxu0
    %1373 = vmatprep.subr.bf16.mxu0 %v1013
    %1374 = vmatpush1.bf16.msra.mxu0 %v1012
    %1375 = vmatprep.subr.bf16.mxu0 %v1017
    %1376 = vmatpush1.bf16.msra.mxu0 %v1016
    %1377 = vmatprep.subr.bf16.mxu0 %v1021
    %1378 = vmatpush1.bf16.msra.mxu0 %v1020
    %1379 = vmatprep.subr.bf16.mxu0 %v1025
    %1380 = vmatpush1.bf16.msra.mxu0 %v1024
    %1381 = vmatprep.subr.bf16.mxu0 %v1029
    %1382 = vmatpush1.bf16.msra.mxu0 %v1028
    %1383 = vmatprep.subr.bf16.mxu0 %v1033
    %1384 = vmatpush1.bf16.msra.mxu0 %v1032
    %1385 = vmatprep.subr.bf16.mxu0 %v1037
    %1386 = vmatpush1.bf16.msra.mxu0 %v1036
    %1387 = vmatprep.subr.bf16.mxu0 %v1041
    %1388 = vmatpush1.bf16.msra.mxu0 %v1040
    %1389 = vmatprep.subr.bf16.mxu0 %v1045
    %1390 = vmatpush1.bf16.msra.mxu0 %v1044
    %1391 = vmatprep.subr.bf16.mxu0 %v1049
    %1392 = vmatpush1.bf16.msra.mxu0 %v1048
    %1393 = vmatprep.subr.bf16.mxu0 %v1053
    %1394 = vmatpush1.bf16.msra.mxu0 %v1052
    %1395 = vmatprep.subr.bf16.mxu0 %v1057
    %1396 = vmatpush1.bf16.msra.mxu0 %v1056
    %1397 = vmatprep.subr.bf16.mxu0 %v1061
    %1398 = vmatpush1.bf16.msra.mxu0 %v1060
    %1399 = vmatprep.subr.bf16.mxu0 %v1065
    %1400 = vmatpush1.bf16.msra.mxu0 %v1064
    %1401 = vmatprep.subr.bf16.mxu0 %v1069
    %1402 = vmatpush1.bf16.msra.mxu0 %v1068
    %1403 = vmatprep.subr.bf16.mxu0 %v1073
    %1404 = vmatpush1.bf16.msra.mxu0 %v1072
    %1405 = vmatprep.mubr.bf16.mxu0 %v155
    %1406 = vmatmul.mubr.bf16.gmra.mrb[0].mxu0 %v154
    %v1407 = vpop.f32.mrb[0].mxu0
    %v1408 = vadd.f32 %v1367, %v1407
    %v1409 = vpop.f32.mrb[0].mxu0
    %v1410 = vadd.f32 %v1369, %v1409
    %v1411 = vpop.f32.mrb[0].mxu0
    %v1412 = vpop.f32.mrb[0].mxu0
    %1413 = vdwg.mxu0
    %1414 = vmatprep.subr.bf16.mxu0 %v1077
    %1415 = vmatpush1.bf16.msra.mxu0 %v1076
    %1416 = vmatprep.subr.bf16.mxu0 %v1081
    %1417 = vmatpush1.bf16.msra.mxu0 %v1080
    %1418 = vmatprep.subr.bf16.mxu0 %v1085
    %1419 = vmatpush1.bf16.msra.mxu0 %v1084
    %1420 = vmatprep.subr.bf16.mxu0 %v1089
    %1421 = vmatpush1.bf16.msra.mxu0 %v1088
    %1422 = vmatprep.subr.bf16.mxu0 %v1093
    %1423 = vmatpush1.bf16.msra.mxu0 %v1092
    %1424 = vmatprep.subr.bf16.mxu0 %v1097
    %1425 = vmatpush1.bf16.msra.mxu0 %v1096
    %1426 = vmatprep.subr.bf16.mxu0 %v1101
    %1427 = vmatpush1.bf16.msra.mxu0 %v1100
    %1428 = vmatprep.subr.bf16.mxu0 %v1105
    %1429 = vmatpush1.bf16.msra.mxu0 %v1104
    %1430 = vmatprep.subr.bf16.mxu0 %v1109
    %1431 = vmatpush1.bf16.msra.mxu0 %v1108
    %1432 = vmatprep.subr.bf16.mxu0 %v1113
    %1433 = vmatpush1.bf16.msra.mxu0 %v1112
    %1434 = vmatprep.subr.bf16.mxu0 %v1117
    %1435 = vmatpush1.bf16.msra.mxu0 %v1116
    %1436 = vmatprep.subr.bf16.mxu0 %v1121
    %1437 = vmatpush1.bf16.msra.mxu0 %v1120
    %1438 = vmatprep.subr.bf16.mxu0 %v1125
    %1439 = vmatpush1.bf16.msra.mxu0 %v1124
    %1440 = vmatprep.subr.bf16.mxu0 %v1129
    %1441 = vmatpush1.bf16.msra.mxu0 %v1128
    %1442 = vmatprep.subr.bf16.mxu0 %v1133
    %1443 = vmatpush1.bf16.msra.mxu0 %v1132
    %1444 = vmatprep.subr.bf16.mxu0 %v1137
    %1445 = vmatpush1.bf16.msra.mxu0 %v1136
    %1446 = vmatprep.mubr.bf16.mxu0 %v157
    %1447 = vmatmul.mubr.bf16.gmra.mrb[0].mxu0 %v156
    %v1448 = vpop.f32.mrb[0].mxu0
    %v1449 = vadd.f32 %v1408, %v1448
    %v1450 = vpop.f32.mrb[0].mxu0
    %v1451 = vadd.f32 %v1410, %v1450
    %v1452 = vpop.f32.mrb[0].mxu0
    %v1453 = vpop.f32.mrb[0].mxu0
    %1454 = vdwg.mxu0
    %1455 = vmatprep.subr.bf16.mxu0 %v951
    %1456 = vmatpush1.bf16.msra.mxu0 %v950
    %1457 = vmatprep.subr.bf16.mxu0 %v955
    %1458 = vmatpush1.bf16.msra.mxu0 %v954
    %1459 = vmatprep.subr.bf16.mxu0 %v959
    %1460 = vmatpush1.bf16.msra.mxu0 %v958
    %1461 = vmatprep.subr.bf16.mxu0 %v963
    %1462 = vmatpush1.bf16.msra.mxu0 %v962
    %1463 = vmatprep.subr.bf16.mxu0 %v967
    %1464 = vmatpush1.bf16.msra.mxu0 %v966
    %1465 = vmatprep.subr.bf16.mxu0 %v971
    %1466 = vmatpush1.bf16.msra.mxu0 %v970
    %1467 = vmatprep.subr.bf16.mxu0 %v975
    %1468 = vmatpush1.bf16.msra.mxu0 %v974
    %1469 = vmatprep.subr.bf16.mxu0 %v979
    %1470 = vmatpush1.bf16.msra.mxu0 %v978
    %1471 = vmatprep.subr.bf16.mxu0 %v983
    %1472 = vmatpush1.bf16.msra.mxu0 %v982
    %1473 = vmatprep.subr.bf16.mxu0 %v987
    %1474 = vmatpush1.bf16.msra.mxu0 %v986
    %1475 = vmatprep.subr.bf16.mxu0 %v991
    %1476 = vmatpush1.bf16.msra.mxu0 %v990
    %1477 = vmatprep.subr.bf16.mxu0 %v995
    %1478 = vmatpush1.bf16.msra.mxu0 %v994
    %1479 = vmatprep.subr.bf16.mxu0 %v999
    %1480 = vmatpush1.bf16.msra.mxu0 %v998
    %1481 = vmatprep.subr.bf16.mxu0 %v1003
    %1482 = vmatpush1.bf16.msra.mxu0 %v1002
    %1483 = vmatprep.subr.bf16.mxu0 %v1007
    %1484 = vmatpush1.bf16.msra.mxu0 %v1006
    %1485 = vmatprep.subr.bf16.mxu0 %v1011
    %1486 = vmatpush1.bf16.msra.mxu0 %v1010
    %1487 = vmatprep.mubr.bf16.mxu0 %v153
    %1488 = vmatmul.mubr.bf16.gmra.mrb[0].mxu0 %v152
    %v1489 = vpop.f32.mrb[0].mxu0
    %v1490 = vadd.f32 %v363, %v1489
    %v1491 = vpop.f32.mrb[0].mxu0
    %v1492 = vadd.f32 %v367, %v1491
    %v1493 = vpop.f32.mrb[0].mxu0
    %v1494 = vpop.f32.mrb[0].mxu0
    %1495 = vdwg.mxu0
    %1496 = vmatprep.subr.bf16.mxu0 %v1015
    %1497 = vmatpush1.bf16.msra.mxu0 %v1014
    %1498 = vmatprep.subr.bf16.mxu0 %v1019
    %1499 = vmatpush1.bf16.msra.mxu0 %v1018
    %1500 = vmatprep.subr.bf16.mxu0 %v1023
    %1501 = vmatpush1.bf16.msra.mxu0 %v1022
    %1502 = vmatprep.subr.bf16.mxu0 %v1027
    %1503 = vmatpush1.bf16.msra.mxu0 %v1026
    %1504 = vmatprep.subr.bf16.mxu0 %v1031
    %1505 = vmatpush1.bf16.msra.mxu0 %v1030
    %1506 = vmatprep.subr.bf16.mxu0 %v1035
    %1507 = vmatpush1.bf16.msra.mxu0 %v1034
    %1508 = vmatprep.subr.bf16.mxu0 %v1039
    %1509 = vmatpush1.bf16.msra.mxu0 %v1038
    %1510 = vmatprep.subr.bf16.mxu0 %v1043
    %1511 = vmatpush1.bf16.msra.mxu0 %v1042
    %1512 = vmatprep.subr.bf16.mxu0 %v1047
    %1513 = vmatpush1.bf16.msra.mxu0 %v1046
    %1514 = vmatprep.subr.bf16.mxu0 %v1051
    %1515 = vmatpush1.bf16.msra.mxu0 %v1050
    %1516 = vmatprep.subr.bf16.mxu0 %v1055
    %1517 = vmatpush1.bf16.msra.mxu0 %v1054
    %1518 = vmatprep.subr.bf16.mxu0 %v1059
    %1519 = vmatpush1.bf16.msra.mxu0 %v1058
    %1520 = vmatprep.subr.bf16.mxu0 %v1063
    %1521 = vmatpush1.bf16.msra.mxu0 %v1062
    %1522 = vmatprep.subr.bf16.mxu0 %v1067
    %1523 = vmatpush1.bf16.msra.mxu0 %v1066
    %1524 = vmatprep.subr.bf16.mxu0 %v1071
    %1525 = vmatpush1.bf16.msra.mxu0 %v1070
    %1526 = vmatprep.subr.bf16.mxu0 %v1075
    %1527 = vmatpush1.bf16.msra.mxu0 %v1074
    %1528 = vmatprep.mubr.bf16.mxu0 %v155
    %1529 = vmatmul.mubr.bf16.gmra.mrb[0].mxu0 %v154
    %v1530 = vpop.f32.mrb[0].mxu0
    %v1531 = vadd.f32 %v1490, %v1530
    %v1532 = vpop.f32.mrb[0].mxu0
    %v1533 = vadd.f32 %v1492, %v1532
    %v1534 = vpop.f32.mrb[0].mxu0
    %v1535 = vpop.f32.mrb[0].mxu0
    %1536 = vdwg.mxu0
    %1537 = vmatprep.subr.bf16.mxu0 %v1079
    %1538 = vmatpush1.bf16.msra.mxu0 %v1078
    %1539 = vmatprep.subr.bf16.mxu0 %v1083
    %1540 = vmatpush1.bf16.msra.mxu0 %v1082
    %1541 = vmatprep.subr.bf16.mxu0 %v1087
    %1542 = vmatpush1.bf16.msra.mxu0 %v1086
    %1543 = vmatprep.subr.bf16.mxu0 %v1091
    %1544 = vmatpush1.bf16.msra.mxu0 %v1090
    %1545 = vmatprep.subr.bf16.mxu0 %v1095
    %1546 = vmatpush1.bf16.msra.mxu0 %v1094
    %1547 = vmatprep.subr.bf16.mxu0 %v1099
    %1548 = vmatpush1.bf16.msra.mxu0 %v1098
    %1549 = vmatprep.subr.bf16.mxu0 %v1103
    %1550 = vmatpush1.bf16.msra.mxu0 %v1102
    %1551 = vmatprep.subr.bf16.mxu0 %v1107
    %1552 = vmatpush1.bf16.msra.mxu0 %v1106
    %1553 = vmatprep.subr.bf16.mxu0 %v1111
    %1554 = vmatpush1.bf16.msra.mxu0 %v1110
    %1555 = vmatprep.subr.bf16.mxu0 %v1115
    %1556 = vmatpush1.bf16.msra.mxu0 %v1114
    %1557 = vmatprep.subr.bf16.mxu0 %v1119
    %1558 = vmatpush1.bf16.msra.mxu0 %v1118
    %1559 = vmatprep.subr.bf16.mxu0 %v1123
    %1560 = vmatpush1.bf16.msra.mxu0 %v1122
    %1561 = vmatprep.subr.bf16.mxu0 %v1127
    %1562 = vmatpush1.bf16.msra.mxu0 %v1126
    %1563 = vmatprep.subr.bf16.mxu0 %v1131
    %1564 = vmatpush1.bf16.msra.mxu0 %v1130
    %1565 = vmatprep.subr.bf16.mxu0 %v1135
    %1566 = vmatpush1.bf16.msra.mxu0 %v1134
    %1567 = vmatprep.subr.bf16.mxu0 %v1139
    %1568 = vmatpush1.bf16.msra.mxu0 %v1138
    %1569 = vmatprep.mubr.bf16.mxu0 %v157
    %1570 = vmatmul.mubr.bf16.gmra.mrb[0].mxu0 %v156
    %v1571 = vpop.f32.mrb[0].mxu0
    %v1572 = vadd.f32 %v1531, %v1571
    %v1573 = vpop.f32.mrb[0].mxu0
    %v1574 = vadd.f32 %v1533, %v1573
    %v1575 = vpop.f32.mrb[0].mxu0
    %v1576 = vpop.f32.mrb[0].mxu0
    %1577 = vdwg.mxu0
    %v1578 = vpack.c.bf16 %v1449, %v1449
    %v1579 = vpack.c.bf16 %v1451, %v1451
    %v1580 = vpack.c.bf16 %v1572, %v1572
    %v1581 = vpack.c.bf16 %v1574, %v1574
    %v1582 = vld [vmem:[#allocation8] sm:$0xff]
    %v1583 = vld [vmem:[#allocation8 + $0x8] sm:$0xf]
    %v1584 = vld [vmem:[#allocation8 + $0xc] sm:$0xff]
    %v1585 = vld [vmem:[#allocation8 + $0x14] sm:$0xf]
    %v1586 = vld [vmem:[#allocation8 + $0x18] sm:$0xff]
    %v1587 = vld [vmem:[#allocation8 + $0x20] sm:$0xf]
    %v1588 = vld [vmem:[#allocation8 + $0x24] sm:$0xff]
    %v1589 = vld [vmem:[#allocation8 + $0x2c] sm:$0xf]
    %v1590 = vld [vmem:[#allocation8 + $0x30] sm:$0xff]
    %v1591 = vld [vmem:[#allocation8 + $0x38] sm:$0xf]
    %v1592 = vld [vmem:[#allocation8 + $0x3c] sm:$0xff]
    %v1593 = vld [vmem:[#allocation8 + $0x44] sm:$0xf]
    %v1594 = vld [vmem:[#allocation8 + $0x48] sm:$0xff]
    %v1595 = vld [vmem:[#allocation8 + $0x50] sm:$0xf]
    %v1596 = vld [vmem:[#allocation8 + $0x54] sm:$0xff]
    %v1597 = vld [vmem:[#allocation8 + $0x5c] sm:$0xf]
    %v1598 = vld [vmem:[#allocation8 + $0x60] sm:$0xff]
    %v1599 = vld [vmem:[#allocation8 + $0x68] sm:$0xf]
    %v1600 = vld [vmem:[#allocation8 + $0x6c] sm:$0xff]
    %v1601 = vld [vmem:[#allocation8 + $0x74] sm:$0xf]
    %v1602 = vld [vmem:[#allocation8 + $0x78] sm:$0xff]
    %v1603 = vld [vmem:[#allocation8 + $0x80] sm:$0xf]
    %v1604 = vld [vmem:[#allocation8 + $0x84] sm:$0xff]
    %v1605 = vld [vmem:[#allocation8 + $0x8c] sm:$0xf]
    %v1606 = vld [vmem:[#allocation8 + $0x90] sm:$0xff]
    %v1607 = vld [vmem:[#allocation8 + $0x98] sm:$0xf]
    %v1608 = vld [vmem:[#allocation8 + $0x9c] sm:$0xff]
    %v1609 = vld [vmem:[#allocation8 + $0xa4] sm:$0xf]
    %v1610 = vld [vmem:[#allocation8 + $0xa8] sm:$0xff]
    %v1611 = vld [vmem:[#allocation8 + $0xb0] sm:$0xf]
    %v1612 = vld [vmem:[#allocation8 + $0xb4] sm:$0xff]
    %v1613 = vld [vmem:[#allocation8 + $0xbc] sm:$0xf]
    %v1614 = vld [vmem:[#allocation8 + $0xc0] sm:$0xff]
    %v1615 = vld [vmem:[#allocation8 + $0xc8] sm:$0xf]
    %v1616 = vld [vmem:[#allocation8 + $0xcc] sm:$0xff]
    %v1617 = vld [vmem:[#allocation8 + $0xd4] sm:$0xf]
    %v1618 = vld [vmem:[#allocation8 + $0xd8] sm:$0xff]
    %v1619 = vld [vmem:[#allocation8 + $0xe0] sm:$0xf]
    %v1620 = vld [vmem:[#allocation8 + $0xe4] sm:$0xff]
    %v1621 = vld [vmem:[#allocation8 + $0xec] sm:$0xf]
    %v1622 = vld [vmem:[#allocation8 + $0xf0] sm:$0xff]
    %v1623 = vld [vmem:[#allocation8 + $0xf8] sm:$0xf]
    %v1624 = vld [vmem:[#allocation8 + $0xfc] sm:$0xff]
    %v1625 = vld [vmem:[#allocation8 + $0x104] sm:$0xf]
    %v1626 = vld [vmem:[#allocation8 + $0x108] sm:$0xff]
    %v1627 = vld [vmem:[#allocation8 + $0x110] sm:$0xf]
    %v1628 = vld [vmem:[#allocation8 + $0x114] sm:$0xff]
    %v1629 = vld [vmem:[#allocation8 + $0x11c] sm:$0xf]
    %v1630 = vld [vmem:[#allocation8 + $0x120] sm:$0xff]
    %v1631 = vld [vmem:[#allocation8 + $0x128] sm:$0xf]
    %v1632 = vld [vmem:[#allocation8 + $0x12c] sm:$0xff]
    %v1633 = vld [vmem:[#allocation8 + $0x134] sm:$0xf]
    %v1634 = vld [vmem:[#allocation8 + $0x138] sm:$0xff]
    %v1635 = vld [vmem:[#allocation8 + $0x140] sm:$0xf]
    %v1636 = vld [vmem:[#allocation8 + $0x144] sm:$0xff]
    %v1637 = vld [vmem:[#allocation8 + $0x14c] sm:$0xf]
    %v1638 = vld [vmem:[#allocation8 + $0x150] sm:$0xff]
    %v1639 = vld [vmem:[#allocation8 + $0x158] sm:$0xf]
    %v1640 = vld [vmem:[#allocation8 + $0x15c] sm:$0xff]
    %v1641 = vld [vmem:[#allocation8 + $0x164] sm:$0xf]
    %v1642 = vld [vmem:[#allocation8 + $0x168] sm:$0xff]
    %v1643 = vld [vmem:[#allocation8 + $0x170] sm:$0xf]
    %v1644 = vld [vmem:[#allocation8 + $0x174] sm:$0xff]
    %v1645 = vld [vmem:[#allocation8 + $0x17c] sm:$0xf]
    %v1646 = vld [vmem:[#allocation8 + $0x180] sm:$0xff]
    %v1647 = vld [vmem:[#allocation8 + $0x188] sm:$0xf]
    %v1648 = vld [vmem:[#allocation8 + $0x18c] sm:$0xff]
    %v1649 = vld [vmem:[#allocation8 + $0x194] sm:$0xf]
    %v1650 = vld [vmem:[#allocation8 + $0x198] sm:$0xff]
    %v1651 = vld [vmem:[#allocation8 + $0x1a0] sm:$0xf]
    %v1652 = vld [vmem:[#allocation8 + $0x1a4] sm:$0xff]
    %v1653 = vld [vmem:[#allocation8 + $0x1ac] sm:$0xf]
    %v1654 = vld [vmem:[#allocation8 + $0x1b0] sm:$0xff]
    %v1655 = vld [vmem:[#allocation8 + $0x1b8] sm:$0xf]
    %v1656 = vld [vmem:[#allocation8 + $0x1bc] sm:$0xff]
    %v1657 = vld [vmem:[#allocation8 + $0x1c4] sm:$0xf]
    %v1658 = vld [vmem:[#allocation8 + $0x1c8] sm:$0xff]
    %v1659 = vld [vmem:[#allocation8 + $0x1d0] sm:$0xf]
    %v1660 = vld [vmem:[#allocation8 + $0x1d4] sm:$0xff]
    %v1661 = vld [vmem:[#allocation8 + $0x1dc] sm:$0xf]
    %v1662 = vld [vmem:[#allocation8 + $0x1e0] sm:$0xff]
    %v1663 = vld [vmem:[#allocation8 + $0x1e8] sm:$0xf]
    %v1664 = vld [vmem:[#allocation8 + $0x1ec] sm:$0xff]
    %v1665 = vld [vmem:[#allocation8 + $0x1f4] sm:$0xf]
    %v1666 = vld [vmem:[#allocation8 + $0x1f8] sm:$0xff]
    %v1667 = vld [vmem:[#allocation8 + $0x200] sm:$0xf]
    %v1668 = vld [vmem:[#allocation8 + $0x204] sm:$0xff]
    %v1669 = vld [vmem:[#allocation8 + $0x20c] sm:$0xf]
    %v1670 = vld [vmem:[#allocation8 + $0x210] sm:$0xff]
    %v1671 = vld [vmem:[#allocation8 + $0x218] sm:$0xf]
    %v1672 = vld [vmem:[#allocation8 + $0x21c] sm:$0xff]
    %v1673 = vld [vmem:[#allocation8 + $0x224] sm:$0xf]
    %v1674 = vld [vmem:[#allocation8 + $0x228] sm:$0xff]
    %v1675 = vld [vmem:[#allocation8 + $0x230] sm:$0xf]
    %v1676 = vld [vmem:[#allocation8 + $0x234] sm:$0xff]
    %v1677 = vld [vmem:[#allocation8 + $0x23c] sm:$0xf]
    %v1678 = vld [vmem:[#allocation8 + $0x240] sm:$0xff]
    %v1679 = vld [vmem:[#allocation8 + $0x248] sm:$0xf]
    %v1680 = vld [vmem:[#allocation8 + $0x24c] sm:$0xff]
    %v1681 = vld [vmem:[#allocation8 + $0x254] sm:$0xf]
    %v1682 = vld [vmem:[#allocation8 + $0x258] sm:$0xff]
    %v1683 = vld [vmem:[#allocation8 + $0x260] sm:$0xf]
    %v1684 = vld [vmem:[#allocation8 + $0x264] sm:$0xff]
    %v1685 = vld [vmem:[#allocation8 + $0x26c] sm:$0xf]
    %v1686 = vld [vmem:[#allocation8 + $0x270] sm:$0xff]
    %v1687 = vld [vmem:[#allocation8 + $0x278] sm:$0xf]
    %v1688 = vld [vmem:[#allocation8 + $0x27c] sm:$0xff]
    %v1689 = vld [vmem:[#allocation8 + $0x284] sm:$0xf]
    %v1690 = vld [vmem:[#allocation8 + $0x288] sm:$0xff]
    %v1691 = vld [vmem:[#allocation8 + $0x290] sm:$0xf]
    %v1692 = vld [vmem:[#allocation8 + $0x294] sm:$0xff]
    %v1693 = vld [vmem:[#allocation8 + $0x29c] sm:$0xf]
    %v1694 = vld [vmem:[#allocation8 + $0x2a0] sm:$0xff]
    %v1695 = vld [vmem:[#allocation8 + $0x2a8] sm:$0xf]
    %v1696 = vld [vmem:[#allocation8 + $0x2ac] sm:$0xff]
    %v1697 = vld [vmem:[#allocation8 + $0x2b4] sm:$0xf]
    %v1698 = vld [vmem:[#allocation8 + $0x2b8] sm:$0xff]
    %v1699 = vld [vmem:[#allocation8 + $0x2c0] sm:$0xf]
    %v1700 = vld [vmem:[#allocation8 + $0x2c4] sm:$0xff]
    %v1701 = vld [vmem:[#allocation8 + $0x2cc] sm:$0xf]
    %v1702 = vld [vmem:[#allocation8 + $0x2d0] sm:$0xff]
    %v1703 = vld [vmem:[#allocation8 + $0x2d8] sm:$0xf]
    %v1704 = vld [vmem:[#allocation8 + $0x2dc] sm:$0xff]
    %v1705 = vld [vmem:[#allocation8 + $0x2e4] sm:$0xf]
    %v1706 = vld [vmem:[#allocation8 + $0x2e8] sm:$0xff]
    %v1707 = vld [vmem:[#allocation8 + $0x2f0] sm:$0xf]
    %v1708 = vld [vmem:[#allocation8 + $0x2f4] sm:$0xff]
    %v1709 = vld [vmem:[#allocation8 + $0x2fc] sm:$0xf]
    %v1710 = vld [vmem:[#allocation10] sm:$0x7]
    %v1712 = vlaneseq
    %v1713 = vshrl.u32 %v1712, 7
    %v1714 = vsub.s32 0, %v1713
    %v1715 = vrot.slane %v1710, %v1714
    %v1716 = vlaneseq
    %v1717 = vshrl.u32 %v1716, 7
    %v1718 = vsub.s32 1, %v1717
    %v1719 = vrot.slane %v1710, %v1718
    %v1720 = vlaneseq
    %v1721 = vshrl.u32 %v1720, 7
    %v1722 = vsub.s32 2, %v1721
    %v1723 = vrot.slane %v1710, %v1722
    %v1855 = vunpack.c.l.b16 %v1582
    %v1856 = vunpack.c.h.b16 %v1582
    %v1857 = vunpack.c.l.b16 %v1583
    %v1858 = vunpack.c.l.b16 %v1584
    %v1859 = vunpack.c.h.b16 %v1584
    %v1860 = vunpack.c.l.b16 %v1585
    %v1861 = vunpack.c.l.b16 %v1586
    %v1862 = vunpack.c.h.b16 %v1586
    %v1863 = vunpack.c.l.b16 %v1587
    %v1864 = vunpack.c.l.b16 %v1588
    %v1865 = vunpack.c.h.b16 %v1588
    %v1866 = vunpack.c.l.b16 %v1589
    %v1867 = vunpack.c.l.b16 %v1590
    %v1868 = vunpack.c.h.b16 %v1590
    %v1869 = vunpack.c.l.b16 %v1591
    %v1870 = vunpack.c.l.b16 %v1592
    %v1871 = vunpack.c.h.b16 %v1592
    %v1872 = vunpack.c.l.b16 %v1593
    %v1873 = vunpack.c.l.b16 %v1594
    %v1874 = vunpack.c.h.b16 %v1594
    %v1875 = vunpack.c.l.b16 %v1595
    %v1876 = vunpack.c.l.b16 %v1596
    %v1877 = vunpack.c.h.b16 %v1596
    %v1878 = vunpack.c.l.b16 %v1597
    %v1879 = vunpack.c.l.b16 %v1598
    %v1880 = vunpack.c.h.b16 %v1598
    %v1881 = vunpack.c.l.b16 %v1599
    %v1882 = vunpack.c.l.b16 %v1600
    %v1883 = vunpack.c.h.b16 %v1600
    %v1884 = vunpack.c.l.b16 %v1601
    %v1885 = vunpack.c.l.b16 %v1602
    %v1886 = vunpack.c.h.b16 %v1602
    %v1887 = vunpack.c.l.b16 %v1603
    %v1888 = vunpack.c.l.b16 %v1604
    %v1889 = vunpack.c.h.b16 %v1604
    %v1890 = vunpack.c.l.b16 %v1605
    %v1891 = vunpack.c.l.b16 %v1606
    %v1892 = vunpack.c.h.b16 %v1606
    %v1893 = vunpack.c.l.b16 %v1607
    %v1894 = vunpack.c.l.b16 %v1608
    %v1895 = vunpack.c.h.b16 %v1608
    %v1896 = vunpack.c.l.b16 %v1609
    %v1897 = vunpack.c.l.b16 %v1610
    %v1898 = vunpack.c.h.b16 %v1610
    %v1899 = vunpack.c.l.b16 %v1611
    %v1900 = vunpack.c.l.b16 %v1612
    %v1901 = vunpack.c.h.b16 %v1612
    %v1902 = vunpack.c.l.b16 %v1613
    %v1903 = vunpack.c.l.b16 %v1614
    %v1904 = vunpack.c.h.b16 %v1614
    %v1905 = vunpack.c.l.b16 %v1615
    %v1906 = vunpack.c.l.b16 %v1616
    %v1907 = vunpack.c.h.b16 %v1616
    %v1908 = vunpack.c.l.b16 %v1617
    %v1909 = vunpack.c.l.b16 %v1618
    %v1910 = vunpack.c.h.b16 %v1618
    %v1911 = vunpack.c.l.b16 %v1619
    %v1912 = vunpack.c.l.b16 %v1620
    %v1913 = vunpack.c.h.b16 %v1620
    %v1914 = vunpack.c.l.b16 %v1621
    %v1915 = vunpack.c.l.b16 %v1622
    %v1916 = vunpack.c.h.b16 %v1622
    %v1917 = vunpack.c.l.b16 %v1623
    %v1918 = vunpack.c.l.b16 %v1624
    %v1919 = vunpack.c.h.b16 %v1624
    %v1920 = vunpack.c.l.b16 %v1625
    %v1921 = vunpack.c.l.b16 %v1626
    %v1922 = vunpack.c.h.b16 %v1626
    %v1923 = vunpack.c.l.b16 %v1627
    %v1924 = vunpack.c.l.b16 %v1628
    %v1925 = vunpack.c.h.b16 %v1628
    %v1926 = vunpack.c.l.b16 %v1629
    %v1927 = vunpack.c.l.b16 %v1630
    %v1928 = vunpack.c.h.b16 %v1630
    %v1929 = vunpack.c.l.b16 %v1631
    %v1930 = vunpack.c.l.b16 %v1632
    %v1931 = vunpack.c.h.b16 %v1632
    %v1932 = vunpack.c.l.b16 %v1633
    %v1933 = vunpack.c.l.b16 %v1634
    %v1934 = vunpack.c.h.b16 %v1634
    %v1935 = vunpack.c.l.b16 %v1635
    %v1936 = vunpack.c.l.b16 %v1636
    %v1937 = vunpack.c.h.b16 %v1636
    %v1938 = vunpack.c.l.b16 %v1637
    %v1939 = vunpack.c.l.b16 %v1638
    %v1940 = vunpack.c.h.b16 %v1638
    %v1941 = vunpack.c.l.b16 %v1639
    %v1942 = vunpack.c.l.b16 %v1640
    %v1943 = vunpack.c.h.b16 %v1640
    %v1944 = vunpack.c.l.b16 %v1641
    %v1945 = vunpack.c.l.b16 %v1642
    %v1946 = vunpack.c.h.b16 %v1642
    %v1947 = vunpack.c.l.b16 %v1643
    %v1948 = vunpack.c.l.b16 %v1644
    %v1949 = vunpack.c.h.b16 %v1644
    %v1950 = vunpack.c.l.b16 %v1645
    %v1951 = vunpack.c.l.b16 %v1646
    %v1952 = vunpack.c.h.b16 %v1646
    %v1953 = vunpack.c.l.b16 %v1647
    %v1954 = vunpack.c.l.b16 %v1648
    %v1955 = vunpack.c.h.b16 %v1648
    %v1956 = vunpack.c.l.b16 %v1649
    %v1957 = vunpack.c.l.b16 %v1650
    %v1958 = vunpack.c.h.b16 %v1650
    %v1959 = vunpack.c.l.b16 %v1651
    %v1960 = vunpack.c.l.b16 %v1652
    %v1961 = vunpack.c.h.b16 %v1652
    %v1962 = vunpack.c.l.b16 %v1653
    %v1963 = vunpack.c.l.b16 %v1654
    %v1964 = vunpack.c.h.b16 %v1654
    %v1965 = vunpack.c.l.b16 %v1655
    %v1966 = vunpack.c.l.b16 %v1656
    %v1967 = vunpack.c.h.b16 %v1656
    %v1968 = vunpack.c.l.b16 %v1657
    %v1969 = vunpack.c.l.b16 %v1658
    %v1970 = vunpack.c.h.b16 %v1658
    %v1971 = vunpack.c.l.b16 %v1659
    %v1972 = vunpack.c.l.b16 %v1660
    %v1973 = vunpack.c.h.b16 %v1660
    %v1974 = vunpack.c.l.b16 %v1661
    %v1975 = vunpack.c.l.b16 %v1662
    %v1976 = vunpack.c.h.b16 %v1662
    %v1977 = vunpack.c.l.b16 %v1663
    %v1978 = vunpack.c.l.b16 %v1664
    %v1979 = vunpack.c.h.b16 %v1664
    %v1980 = vunpack.c.l.b16 %v1665
    %v1981 = vunpack.c.l.b16 %v1666
    %v1982 = vunpack.c.h.b16 %v1666
    %v1983 = vunpack.c.l.b16 %v1667
    %v1984 = vunpack.c.l.b16 %v1668
    %v1985 = vunpack.c.h.b16 %v1668
    %v1986 = vunpack.c.l.b16 %v1669
    %v1987 = vunpack.c.l.b16 %v1670
    %v1988 = vunpack.c.h.b16 %v1670
    %v1989 = vunpack.c.l.b16 %v1671
    %v1990 = vunpack.c.l.b16 %v1672
    %v1991 = vunpack.c.h.b16 %v1672
    %v1992 = vunpack.c.l.b16 %v1673
    %v1993 = vunpack.c.l.b16 %v1674
    %v1994 = vunpack.c.h.b16 %v1674
    %v1995 = vunpack.c.l.b16 %v1675
    %v1996 = vunpack.c.l.b16 %v1676
    %v1997 = vunpack.c.h.b16 %v1676
    %v1998 = vunpack.c.l.b16 %v1677
    %v1999 = vunpack.c.l.b16 %v1678
    %v2000 = vunpack.c.h.b16 %v1678
    %v2001 = vunpack.c.l.b16 %v1679
    %v2002 = vunpack.c.l.b16 %v1680
    %v2003 = vunpack.c.h.b16 %v1680
    %v2004 = vunpack.c.l.b16 %v1681
    %v2005 = vunpack.c.l.b16 %v1682
    %v2006 = vunpack.c.h.b16 %v1682
    %v2007 = vunpack.c.l.b16 %v1683
    %v2008 = vunpack.c.l.b16 %v1684
    %v2009 = vunpack.c.h.b16 %v1684
    %v2010 = vunpack.c.l.b16 %v1685
    %v2011 = vunpack.c.l.b16 %v1686
    %v2012 = vunpack.c.h.b16 %v1686
    %v2013 = vunpack.c.l.b16 %v1687
    %v2014 = vunpack.c.l.b16 %v1688
    %v2015 = vunpack.c.h.b16 %v1688
    %v2016 = vunpack.c.l.b16 %v1689
    %v2017 = vunpack.c.l.b16 %v1690
    %v2018 = vunpack.c.h.b16 %v1690
    %v2019 = vunpack.c.l.b16 %v1691
    %v2020 = vunpack.c.l.b16 %v1692
    %v2021 = vunpack.c.h.b16 %v1692
    %v2022 = vunpack.c.l.b16 %v1693
    %v2023 = vunpack.c.l.b16 %v1694
    %v2024 = vunpack.c.h.b16 %v1694
    %v2025 = vunpack.c.l.b16 %v1695
    %v2026 = vunpack.c.l.b16 %v1696
    %v2027 = vunpack.c.h.b16 %v1696
    %v2028 = vunpack.c.l.b16 %v1697
    %v2029 = vunpack.c.l.b16 %v1698
    %v2030 = vunpack.c.h.b16 %v1698
    %v2031 = vunpack.c.l.b16 %v1699
    %v2032 = vunpack.c.l.b16 %v1700
    %v2033 = vunpack.c.h.b16 %v1700
    %v2034 = vunpack.c.l.b16 %v1701
    %v2035 = vunpack.c.l.b16 %v1702
    %v2036 = vunpack.c.h.b16 %v1702
    %v2037 = vunpack.c.l.b16 %v1703
    %v2038 = vunpack.c.l.b16 %v1704
    %v2039 = vunpack.c.h.b16 %v1704
    %v2040 = vunpack.c.l.b16 %v1705
    %v2041 = vunpack.c.l.b16 %v1706
    %v2042 = vunpack.c.h.b16 %v1706
    %v2043 = vunpack.c.l.b16 %v1707
    %v2044 = vunpack.c.l.b16 %v1708
    %v2045 = vunpack.c.h.b16 %v1708
    %v2046 = vunpack.c.l.b16 %v1709
    %v2047 = vpack.c.b16 %v1858, %v1855
    %v2048 = vpack.c.b16 %v1859, %v1856
    %v2049 = vpack.c.b16 %v1860, %v1857
    %v2050 = vpack.c.b16 %v1864, %v1861
    %v2051 = vpack.c.b16 %v1865, %v1862
    %v2052 = vpack.c.b16 %v1866, %v1863
    %v2053 = vpack.c.b16 %v1870, %v1867
    %v2054 = vpack.c.b16 %v1871, %v1868
    %v2055 = vpack.c.b16 %v1872, %v1869
    %v2056 = vpack.c.b16 %v1876, %v1873
    %v2057 = vpack.c.b16 %v1877, %v1874
    %v2058 = vpack.c.b16 %v1878, %v1875
    %v2059 = vpack.c.b16 %v1882, %v1879
    %v2060 = vpack.c.b16 %v1883, %v1880
    %v2061 = vpack.c.b16 %v1884, %v1881
    %v2062 = vpack.c.b16 %v1888, %v1885
    %v2063 = vpack.c.b16 %v1889, %v1886
    %v2064 = vpack.c.b16 %v1890, %v1887
    %v2065 = vpack.c.b16 %v1894, %v1891
    %v2066 = vpack.c.b16 %v1895, %v1892
    %v2067 = vpack.c.b16 %v1896, %v1893
    %v2068 = vpack.c.b16 %v1900, %v1897
    %v2069 = vpack.c.b16 %v1901, %v1898
    %v2070 = vpack.c.b16 %v1902, %v1899
    %v2071 = vpack.c.b16 %v1906, %v1903
    %v2072 = vpack.c.b16 %v1907, %v1904
    %v2073 = vpack.c.b16 %v1908, %v1905
    %v2074 = vpack.c.b16 %v1912, %v1909
    %v2075 = vpack.c.b16 %v1913, %v1910
    %v2076 = vpack.c.b16 %v1914, %v1911
    %v2077 = vpack.c.b16 %v1918, %v1915
    %v2078 = vpack.c.b16 %v1919, %v1916
    %v2079 = vpack.c.b16 %v1920, %v1917
    %v2080 = vpack.c.b16 %v1924, %v1921
    %v2081 = vpack.c.b16 %v1925, %v1922
    %v2082 = vpack.c.b16 %v1926, %v1923
    %v2083 = vpack.c.b16 %v1930, %v1927
    %v2084 = vpack.c.b16 %v1931, %v1928
    %v2085 = vpack.c.b16 %v1932, %v1929
    %v2086 = vpack.c.b16 %v1936, %v1933
    %v2087 = vpack.c.b16 %v1937, %v1934
    %v2088 = vpack.c.b16 %v1938, %v1935
    %v2089 = vpack.c.b16 %v1942, %v1939
    %v2090 = vpack.c.b16 %v1943, %v1940
    %v2091 = vpack.c.b16 %v1944, %v1941
    %v2092 = vpack.c.b16 %v1948, %v1945
    %v2093 = vpack.c.b16 %v1949, %v1946
    %v2094 = vpack.c.b16 %v1950, %v1947
    %v2095 = vpack.c.b16 %v1954, %v1951
    %v2096 = vpack.c.b16 %v1955, %v1952
    %v2097 = vpack.c.b16 %v1956, %v1953
    %v2098 = vpack.c.b16 %v1960, %v1957
    %v2099 = vpack.c.b16 %v1961, %v1958
    %v2100 = vpack.c.b16 %v1962, %v1959
    %v2101 = vpack.c.b16 %v1966, %v1963
    %v2102 = vpack.c.b16 %v1967, %v1964
    %v2103 = vpack.c.b16 %v1968, %v1965
    %v2104 = vpack.c.b16 %v1972, %v1969
    %v2105 = vpack.c.b16 %v1973, %v1970
    %v2106 = vpack.c.b16 %v1974, %v1971
    %v2107 = vpack.c.b16 %v1978, %v1975
    %v2108 = vpack.c.b16 %v1979, %v1976
    %v2109 = vpack.c.b16 %v1980, %v1977
    %v2110 = vpack.c.b16 %v1984, %v1981
    %v2111 = vpack.c.b16 %v1985, %v1982
    %v2112 = vpack.c.b16 %v1986, %v1983
    %v2113 = vpack.c.b16 %v1990, %v1987
    %v2114 = vpack.c.b16 %v1991, %v1988
    %v2115 = vpack.c.b16 %v1992, %v1989
    %v2116 = vpack.c.b16 %v1996, %v1993
    %v2117 = vpack.c.b16 %v1997, %v1994
    %v2118 = vpack.c.b16 %v1998, %v1995
    %v2119 = vpack.c.b16 %v2002, %v1999
    %v2120 = vpack.c.b16 %v2003, %v2000
    %v2121 = vpack.c.b16 %v2004, %v2001
    %v2122 = vpack.c.b16 %v2008, %v2005
    %v2123 = vpack.c.b16 %v2009, %v2006
    %v2124 = vpack.c.b16 %v2010, %v2007
    %v2125 = vpack.c.b16 %v2014, %v2011
    %v2126 = vpack.c.b16 %v2015, %v2012
    %v2127 = vpack.c.b16 %v2016, %v2013
    %v2128 = vpack.c.b16 %v2020, %v2017
    %v2129 = vpack.c.b16 %v2021, %v2018
    %v2130 = vpack.c.b16 %v2022, %v2019
    %v2131 = vpack.c.b16 %v2026, %v2023
    %v2132 = vpack.c.b16 %v2027, %v2024
    %v2133 = vpack.c.b16 %v2028, %v2025
    %v2134 = vpack.c.b16 %v2032, %v2029
    %v2135 = vpack.c.b16 %v2033, %v2030
    %v2136 = vpack.c.b16 %v2034, %v2031
    %v2137 = vpack.c.b16 %v2038, %v2035
    %v2138 = vpack.c.b16 %v2039, %v2036
    %v2139 = vpack.c.b16 %v2040, %v2037
    %v2140 = vpack.c.b16 %v2044, %v2041
    %v2141 = vpack.c.b16 %v2045, %v2042
    %v2142 = vpack.c.b16 %v2046, %v2043
    %2239 = vmatprep.subr.bf16.mxu0 %v2048
    %2240 = vmatpush1.bf16.msra.mxu0 %v2047
    %2241 = vmatprep.subr.bf16.mxu0 %v2051
    %2242 = vmatpush1.bf16.msra.mxu0 %v2050
    %2243 = vmatprep.subr.bf16.mxu0 %v2054
    %2244 = vmatpush1.bf16.msra.mxu0 %v2053
    %2245 = vmatprep.subr.bf16.mxu0 %v2057
    %2246 = vmatpush1.bf16.msra.mxu0 %v2056
    %2247 = vmatprep.subr.bf16.mxu0 %v2060
    %2248 = vmatpush1.bf16.msra.mxu0 %v2059
    %2249 = vmatprep.subr.bf16.mxu0 %v2063
    %2250 = vmatpush1.bf16.msra.mxu0 %v2062
    %2251 = vmatprep.subr.bf16.mxu0 %v2066
    %2252 = vmatpush1.bf16.msra.mxu0 %v2065
    %2253 = vmatprep.subr.bf16.mxu0 %v2069
    %2254 = vmatpush1.bf16.msra.mxu0 %v2068
    %2255 = vmatprep.subr.bf16.mxu0 %v2072
    %2256 = vmatpush1.bf16.msra.mxu0 %v2071
    %2257 = vmatprep.subr.bf16.mxu0 %v2075
    %2258 = vmatpush1.bf16.msra.mxu0 %v2074
    %2259 = vmatprep.subr.bf16.mxu0 %v2078
    %2260 = vmatpush1.bf16.msra.mxu0 %v2077
    %2261 = vmatprep.subr.bf16.mxu0 %v2081
    %2262 = vmatpush1.bf16.msra.mxu0 %v2080
    %2263 = vmatprep.subr.bf16.mxu0 %v2084
    %2264 = vmatpush1.bf16.msra.mxu0 %v2083
    %2265 = vmatprep.subr.bf16.mxu0 %v2087
    %2266 = vmatpush1.bf16.msra.mxu0 %v2086
    %2267 = vmatprep.subr.bf16.mxu0 %v2090
    %2268 = vmatpush1.bf16.msra.mxu0 %v2089
    %2269 = vmatprep.subr.bf16.mxu0 %v2093
    %2270 = vmatpush1.bf16.msra.mxu0 %v2092
    %2271 = vmatprep.mubr.bf16.mxu0 %v1579
    %2272 = vmatmul.mubr.bf16.gmra.mrb[0].mxu0 %v1578
    %v2273 = vpop.f32.mrb[0].mxu0
    %v2274 = vadd.f32 %v1715, %v2273
    %v2275 = vpop.f32.mrb[0].mxu0
    %v2276 = vadd.f32 %v1719, %v2275
    %v2277 = vpop.f32.mrb[0].mxu0
    %v2278 = vpop.f32.mrb[0].mxu0
    %2279 = vdwg.mxu0
    %2280 = vmatprep.subr.bf16.mxu0 %v2096
    %2281 = vmatpush1.bf16.msra.mxu0 %v2095
    %2282 = vmatprep.subr.bf16.mxu0 %v2099
    %2283 = vmatpush1.bf16.msra.mxu0 %v2098
    %2284 = vmatprep.subr.bf16.mxu0 %v2102
    %2285 = vmatpush1.bf16.msra.mxu0 %v2101
    %2286 = vmatprep.subr.bf16.mxu0 %v2105
    %2287 = vmatpush1.bf16.msra.mxu0 %v2104
    %2288 = vmatprep.subr.bf16.mxu0 %v2108
    %2289 = vmatpush1.bf16.msra.mxu0 %v2107
    %2290 = vmatprep.subr.bf16.mxu0 %v2111
    %2291 = vmatpush1.bf16.msra.mxu0 %v2110
    %2292 = vmatprep.subr.bf16.mxu0 %v2114
    %2293 = vmatpush1.bf16.msra.mxu0 %v2113
    %2294 = vmatprep.subr.bf16.mxu0 %v2117
    %2295 = vmatpush1.bf16.msra.mxu0 %v2116
    %2296 = vmatprep.subr.bf16.mxu0 %v2120
    %2297 = vmatpush1.bf16.msra.mxu0 %v2119
    %2298 = vmatprep.subr.bf16.mxu0 %v2123
    %2299 = vmatpush1.bf16.msra.mxu0 %v2122
    %2300 = vmatprep.subr.bf16.mxu0 %v2126
    %2301 = vmatpush1.bf16.msra.mxu0 %v2125
    %2302 = vmatprep.subr.bf16.mxu0 %v2129
    %2303 = vmatpush1.bf16.msra.mxu0 %v2128
    %2304 = vmatprep.subr.bf16.mxu0 %v2132
    %2305 = vmatpush1.bf16.msra.mxu0 %v2131
    %2306 = vmatprep.subr.bf16.mxu0 %v2135
    %2307 = vmatpush1.bf16.msra.mxu0 %v2134
    %2308 = vmatprep.subr.bf16.mxu0 %v2138
    %2309 = vmatpush1.bf16.msra.mxu0 %v2137
    %2310 = vmatprep.subr.bf16.mxu0 %v2141
    %2311 = vmatpush1.bf16.msra.mxu0 %v2140
    %2312 = vmatprep.mubr.bf16.mxu0 %v1581
    %2313 = vmatmul.mubr.bf16.gmra.mrb[0].mxu0 %v1580
    %v2314 = vpop.f32.mrb[0].mxu0
    %v2315 = vadd.f32 %v2274, %v2314
    %v2316 = vpop.f32.mrb[0].mxu0
    %v2317 = vadd.f32 %v2276, %v2316
    %v2318 = vpop.f32.mrb[0].mxu0
    %v2319 = vpop.f32.mrb[0].mxu0
    %2320 = vdwg.mxu0
    %2321 = vmatprep.subr.bf16.mxu0 0
    %2322 = vmatpush1.bf16.msra.mxu0 %v2049
    %2323 = vmatprep.subr.bf16.mxu0 0
    %2324 = vmatpush1.bf16.msra.mxu0 %v2052
    %2325 = vmatprep.subr.bf16.mxu0 0
    %2326 = vmatpush1.bf16.msra.mxu0 %v2055
    %2327 = vmatprep.subr.bf16.mxu0 0
    %2328 = vmatpush1.bf16.msra.mxu0 %v2058
    %2329 = vmatprep.subr.bf16.mxu0 0
    %2330 = vmatpush1.bf16.msra.mxu0 %v2061
    %2331 = vmatprep.subr.bf16.mxu0 0
    %2332 = vmatpush1.bf16.msra.mxu0 %v2064
    %2333 = vmatprep.subr.bf16.mxu0 0
    %2334 = vmatpush1.bf16.msra.mxu0 %v2067
    %2335 = vmatprep.subr.bf16.mxu0 0
    %2336 = vmatpush1.bf16.msra.mxu0 %v2070
    %2337 = vmatprep.subr.bf16.mxu0 0
    %2338 = vmatpush1.bf16.msra.mxu0 %v2073
    %2339 = vmatprep.subr.bf16.mxu0 0
    %2340 = vmatpush1.bf16.msra.mxu0 %v2076
    %2341 = vmatprep.subr.bf16.mxu0 0
    %2342 = vmatpush1.bf16.msra.mxu0 %v2079
    %2343 = vmatprep.subr.bf16.mxu0 0
    %2344 = vmatpush1.bf16.msra.mxu0 %v2082
    %2345 = vmatprep.subr.bf16.mxu0 0
    %2346 = vmatpush1.bf16.msra.mxu0 %v2085
    %2347 = vmatprep.subr.bf16.mxu0 0
    %2348 = vmatpush1.bf16.msra.mxu0 %v2088
    %2349 = vmatprep.subr.bf16.mxu0 0
    %2350 = vmatpush1.bf16.msra.mxu0 %v2091
    %2351 = vmatprep.subr.bf16.mxu0 0
    %2352 = vmatpush1.bf16.msra.mxu0 %v2094
    %2353 = vmatprep.mubr.bf16.mxu0 %v1579
    %2354 = vmatmul.mubr.bf16.gmra.mrb[0].mxu0 %v1578
    %v2355 = vpop.f32.mrb[0].mxu0
    %v2356 = vadd.f32 %v1723, %v2355
    %v2357 = vpop.f32.mrb[0].mxu0
    %v2358 = vpop.f32.mrb[0].mxu0
    %v2359 = vpop.f32.mrb[0].mxu0
    %2360 = vdwg.mxu0
    %2361 = vmatprep.subr.bf16.mxu0 0
    %2362 = vmatpush1.bf16.msra.mxu0 %v2097
    %2363 = vmatprep.subr.bf16.mxu0 0
    %2364 = vmatpush1.bf16.msra.mxu0 %v2100
    %2365 = vmatprep.subr.bf16.mxu0 0
    %2366 = vmatpush1.bf16.msra.mxu0 %v2103
    %2367 = vmatprep.subr.bf16.mxu0 0
    %2368 = vmatpush1.bf16.msra.mxu0 %v2106
    %2369 = vmatprep.subr.bf16.mxu0 0
    %2370 = vmatpush1.bf16.msra.mxu0 %v2109
    %2371 = vmatprep.subr.bf16.mxu0 0
    %2372 = vmatpush1.bf16.msra.mxu0 %v2112
    %2373 = vmatprep.subr.bf16.mxu0 0
    %2374 = vmatpush1.bf16.msra.mxu0 %v2115
    %2375 = vmatprep.subr.bf16.mxu0 0
    %2376 = vmatpush1.bf16.msra.mxu0 %v2118
    %2377 = vmatprep.subr.bf16.mxu0 0
    %2378 = vmatpush1.bf16.msra.mxu0 %v2121
    %2379 = vmatprep.subr.bf16.mxu0 0
    %2380 = vmatpush1.bf16.msra.mxu0 %v2124
    %2381 = vmatprep.subr.bf16.mxu0 0
    %2382 = vmatpush1.bf16.msra.mxu0 %v2127
    %2383 = vmatprep.subr.bf16.mxu0 0
    %2384 = vmatpush1.bf16.msra.mxu0 %v2130
    %2385 = vmatprep.subr.bf16.mxu0 0
    %2386 = vmatpush1.bf16.msra.mxu0 %v2133
    %2387 = vmatprep.subr.bf16.mxu0 0
    %2388 = vmatpush1.bf16.msra.mxu0 %v2136
    %2389 = vmatprep.subr.bf16.mxu0 0
    %2390 = vmatpush1.bf16.msra.mxu0 %v2139
    %2391 = vmatprep.subr.bf16.mxu0 0
    %2392 = vmatpush1.bf16.msra.mxu0 %v2142
    %2393 = vmatprep.mubr.bf16.mxu0 %v1581
    %2394 = vmatmul.mubr.bf16.gmra.mrb[0].mxu0 %v1580
    %v2395 = vpop.f32.mrb[0].mxu0
    %v2396 = vadd.f32 %v2356, %v2395
    %v2397 = vpop.f32.mrb[0].mxu0
    %v2398 = vpop.f32.mrb[0].mxu0
    %v2399 = vpop.f32.mrb[0].mxu0
    %2400 = vdwg.mxu0
    %v2401 = vmax.f32 %v2315, 0.0
    %v2402 = vmax.f32 %v2317, 0.0
    %v2403 = vmax.f32 %v2396, 0.0
    %v2404 = vpack.c.bf16 %v2401, %v2401
    %v2405 = vpack.c.bf16 %v2402, %v2402
    %v2406 = vpack.c.bf16 %v2403, %v2403
    %v2407 = vld [vmem:[#allocation11] sm:$0xf]
    %v2408 = vld [vmem:[#allocation11 + $0x4] sm:$0xf]
    %v2409 = vld [vmem:[#allocation11 + $0x8] sm:$0xf]
    %v2410 = vld [vmem:[#allocation11 + $0xc] sm:$0xf]
    %v2411 = vld [vmem:[#allocation11 + $0x10] sm:$0xf]
    %v2412 = vld [vmem:[#allocation11 + $0x14] sm:$0xf]
    %v2413 = vld [vmem:[#allocation11 + $0x18] sm:$0xf]
    %v2414 = vld [vmem:[#allocation11 + $0x1c] sm:$0xf]
    %v2415 = vld [vmem:[#allocation11 + $0x20] sm:$0xf]
    %v2416 = vld [vmem:[#allocation11 + $0x24] sm:$0xf]
    %v2417 = vld [vmem:[#allocation11 + $0x28] sm:$0xf]
    %v2418 = vld [vmem:[#allocation11 + $0x2c] sm:$0xf]
    %v2419 = vld [vmem:[#allocation11 + $0x30] sm:$0xf]
    %v2420 = vld [vmem:[#allocation11 + $0x34] sm:$0xf]
    %v2421 = vld [vmem:[#allocation11 + $0x38] sm:$0xf]
    %v2422 = vld [vmem:[#allocation11 + $0x3c] sm:$0xf]
    %v2423 = vld [vmem:[#allocation11 + $0x40] sm:$0xf]
    %v2424 = vld [vmem:[#allocation11 + $0x44] sm:$0xf]
    %v2425 = vld [vmem:[#allocation11 + $0x48] sm:$0xf]
    %v2426 = vld [vmem:[#allocation11 + $0x4c] sm:$0xf]
    %v2427 = vld [vmem:[#allocation11 + $0x50] sm:$0xf]
    %v2428 = vld [vmem:[#allocation11 + $0x54] sm:$0xf]
    %v2429 = vld [vmem:[#allocation11 + $0x58] sm:$0xf]
    %v2430 = vld [vmem:[#allocation11 + $0x5c] sm:$0xf]
    %v2431 = vld [vmem:[#allocation11 + $0x60] sm:$0xf]
    %v2432 = vld [vmem:[#allocation11 + $0x64] sm:$0xf]
    %v2433 = vld [vmem:[#allocation11 + $0x68] sm:$0xf]
    %v2434 = vld [vmem:[#allocation11 + $0x6c] sm:$0xf]
    %v2435 = vld [vmem:[#allocation11 + $0x70] sm:$0xf]
    %v2436 = vld [vmem:[#allocation11 + $0x74] sm:$0xf]
    %v2437 = vld [vmem:[#allocation11 + $0x78] sm:$0xf]
    %v2438 = vld [vmem:[#allocation11 + $0x7c] sm:$0xf]
    %v2439 = vld [vmem:[#allocation11 + $0x80] sm:$0xf]
    %v2440 = vld [vmem:[#allocation11 + $0x84] sm:$0xf]
    %v2441 = vld [vmem:[#allocation11 + $0x88] sm:$0xf]
    %v2442 = vld [vmem:[#allocation11 + $0x8c] sm:$0xf]
    %v2443 = vld [vmem:[#allocation11 + $0x90] sm:$0xf]
    %v2444 = vld [vmem:[#allocation11 + $0x94] sm:$0xf]
    %v2445 = vld [vmem:[#allocation11 + $0x98] sm:$0xf]
    %v2446 = vld [vmem:[#allocation11 + $0x9c] sm:$0xf]
    %v2447 = vld [vmem:[#allocation11 + $0xa0] sm:$0xf]
    %v2448 = vld [vmem:[#allocation11 + $0xa4] sm:$0xf]
    %v2449 = vld [vmem:[#allocation11 + $0xa8] sm:$0xf]
    %v2450 = vld [vmem:[#allocation11 + $0xac] sm:$0xf]
    %v2451 = vld [vmem:[#allocation11 + $0xb0] sm:$0xf]
    %v2452 = vld [vmem:[#allocation11 + $0xb4] sm:$0xf]
    %v2453 = vld [vmem:[#allocation11 + $0xb8] sm:$0xf]
    %v2454 = vld [vmem:[#allocation11 + $0xbc] sm:$0xf]
    %v2455 = vld [vmem:[#allocation13] sm:$0x1]
    %v2457 = vlaneseq
    %v2458 = vshrl.u32 %v2457, 7
    %v2459 = vsub.s32 0, %v2458
    %v2460 = vrot.slane %v2455, %v2459
    %v2510 = vunpack.c.l.b16 %v2407
    %v2511 = vunpack.c.l.b16 %v2408
    %v2512 = vunpack.c.l.b16 %v2409
    %v2513 = vunpack.c.l.b16 %v2410
    %v2514 = vunpack.c.l.b16 %v2411
    %v2515 = vunpack.c.l.b16 %v2412
    %v2516 = vunpack.c.l.b16 %v2413
    %v2517 = vunpack.c.l.b16 %v2414
    %v2518 = vunpack.c.l.b16 %v2415
    %v2519 = vunpack.c.l.b16 %v2416
    %v2520 = vunpack.c.l.b16 %v2417
    %v2521 = vunpack.c.l.b16 %v2418
    %v2522 = vunpack.c.l.b16 %v2419
    %v2523 = vunpack.c.l.b16 %v2420
    %v2524 = vunpack.c.l.b16 %v2421
    %v2525 = vunpack.c.l.b16 %v2422
    %v2526 = vunpack.c.l.b16 %v2423
    %v2527 = vunpack.c.l.b16 %v2424
    %v2528 = vunpack.c.l.b16 %v2425
    %v2529 = vunpack.c.l.b16 %v2426
    %v2530 = vunpack.c.l.b16 %v2427
    %v2531 = vunpack.c.l.b16 %v2428
    %v2532 = vunpack.c.l.b16 %v2429
    %v2533 = vunpack.c.l.b16 %v2430
    %v2534 = vunpack.c.l.b16 %v2431
    %v2535 = vunpack.c.l.b16 %v2432
    %v2536 = vunpack.c.l.b16 %v2433
    %v2537 = vunpack.c.l.b16 %v2434
    %v2538 = vunpack.c.l.b16 %v2435
    %v2539 = vunpack.c.l.b16 %v2436
    %v2540 = vunpack.c.l.b16 %v2437
    %v2541 = vunpack.c.l.b16 %v2438
    %v2542 = vunpack.c.l.b16 %v2439
    %v2543 = vunpack.c.l.b16 %v2440
    %v2544 = vunpack.c.l.b16 %v2441
    %v2545 = vunpack.c.l.b16 %v2442
    %v2546 = vunpack.c.l.b16 %v2443
    %v2547 = vunpack.c.l.b16 %v2444
    %v2548 = vunpack.c.l.b16 %v2445
    %v2549 = vunpack.c.l.b16 %v2446
    %v2550 = vunpack.c.l.b16 %v2447
    %v2551 = vunpack.c.l.b16 %v2448
    %v2552 = vunpack.c.l.b16 %v2449
    %v2553 = vunpack.c.l.b16 %v2450
    %v2554 = vunpack.c.l.b16 %v2451
    %v2555 = vunpack.c.l.b16 %v2452
    %v2556 = vunpack.c.l.b16 %v2453
    %v2557 = vunpack.c.l.b16 %v2454
    %v2558 = vpack.c.b16 %v2511, %v2510
    %v2559 = vpack.c.b16 %v2513, %v2512
    %v2560 = vpack.c.b16 %v2515, %v2514
    %v2561 = vpack.c.b16 %v2517, %v2516
    %v2562 = vpack.c.b16 %v2519, %v2518
    %v2563 = vpack.c.b16 %v2521, %v2520
    %v2564 = vpack.c.b16 %v2523, %v2522
    %v2565 = vpack.c.b16 %v2525, %v2524
    %v2566 = vpack.c.b16 %v2527, %v2526
    %v2567 = vpack.c.b16 %v2529, %v2528
    %v2568 = vpack.c.b16 %v2531, %v2530
    %v2569 = vpack.c.b16 %v2533, %v2532
    %v2570 = vpack.c.b16 %v2535, %v2534
    %v2571 = vpack.c.b16 %v2537, %v2536
    %v2572 = vpack.c.b16 %v2539, %v2538
    %v2573 = vpack.c.b16 %v2541, %v2540
    %v2574 = vpack.c.b16 %v2543, %v2542
    %v2575 = vpack.c.b16 %v2545, %v2544
    %v2576 = vpack.c.b16 %v2547, %v2546
    %v2577 = vpack.c.b16 %v2549, %v2548
    %v2578 = vpack.c.b16 %v2551, %v2550
    %v2579 = vpack.c.b16 %v2553, %v2552
    %v2580 = vpack.c.b16 %v2555, %v2554
    %v2581 = vpack.c.b16 %v2557, %v2556
    %2606 = vmatprep.subr.bf16.mxu0 0
    %2607 = vmatpush1.bf16.msra.mxu0 %v2558
    %2608 = vmatprep.subr.bf16.mxu0 0
    %2609 = vmatpush1.bf16.msra.mxu0 %v2559
    %2610 = vmatprep.subr.bf16.mxu0 0
    %2611 = vmatpush1.bf16.msra.mxu0 %v2560
    %2612 = vmatprep.subr.bf16.mxu0 0
    %2613 = vmatpush1.bf16.msra.mxu0 %v2561
    %2614 = vmatprep.subr.bf16.mxu0 0
    %2615 = vmatpush1.bf16.msra.mxu0 %v2562
    %2616 = vmatprep.subr.bf16.mxu0 0
    %2617 = vmatpush1.bf16.msra.mxu0 %v2563
    %2618 = vmatprep.subr.bf16.mxu0 0
    %2619 = vmatpush1.bf16.msra.mxu0 %v2564
    %2620 = vmatprep.subr.bf16.mxu0 0
    %2621 = vmatpush1.bf16.msra.mxu0 %v2565
    %2622 = vmatprep.subr.bf16.mxu0 0
    %2623 = vmatpush1.bf16.msra.mxu0 %v2566
    %2624 = vmatprep.subr.bf16.mxu0 0
    %2625 = vmatpush1.bf16.msra.mxu0 %v2567
    %2626 = vmatprep.subr.bf16.mxu0 0
    %2627 = vmatpush1.bf16.msra.mxu0 %v2568
    %2628 = vmatprep.subr.bf16.mxu0 0
    %2629 = vmatpush1.bf16.msra.mxu0 %v2569
    %2630 = vmatprep.subr.bf16.mxu0 0
    %2631 = vmatpush1.bf16.msra.mxu0 %v2570
    %2632 = vmatprep.subr.bf16.mxu0 0
    %2633 = vmatpush1.bf16.msra.mxu0 %v2571
    %2634 = vmatprep.subr.bf16.mxu0 0
    %2635 = vmatpush1.bf16.msra.mxu0 %v2572
    %2636 = vmatprep.subr.bf16.mxu0 0
    %2637 = vmatpush1.bf16.msra.mxu0 %v2573
    %2638 = vmatprep.mubr.bf16.mxu0 %v2405
    %2639 = vmatmul.mubr.bf16.gmra.mrb[0].mxu0 %v2404
    %v2640 = vpop.f32.mrb[0].mxu0
    %v2641 = vadd.f32 %v2460, %v2640
    %v2642 = vpop.f32.mrb[0].mxu0
    %v2643 = vpop.f32.mrb[0].mxu0
    %v2644 = vpop.f32.mrb[0].mxu0
    %2645 = vdwg.mxu0
    %2646 = vmatprep.subr.bf16.mxu0 0
    %2647 = vmatpush1.bf16.msra.mxu0 %v2574
    %2648 = vmatprep.subr.bf16.mxu0 0
    %2649 = vmatpush1.bf16.msra.mxu0 %v2575
    %2650 = vmatprep.subr.bf16.mxu0 0
    %2651 = vmatpush1.bf16.msra.mxu0 %v2576
    %2652 = vmatprep.subr.bf16.mxu0 0
    %2653 = vmatpush1.bf16.msra.mxu0 %v2577
    %2654 = vmatprep.subr.bf16.mxu0 0
    %2655 = vmatpush1.bf16.msra.mxu0 %v2578
    %2656 = vmatprep.subr.bf16.mxu0 0
    %2657 = vmatpush1.bf16.msra.mxu0 %v2579
    %2658 = vmatprep.subr.bf16.mxu0 0
    %2659 = vmatpush1.bf16.msra.mxu0 %v2580
    %2660 = vmatprep.subr.bf16.mxu0 0
    %2661 = vmatpush1.bf16.msra.mxu0 %v2581
    %2662 = vmatprep.subr.bf16.mxu0 0
    %2663 = vmatpush1.bf16.msra.mxu0 0
    %2664 = vmatprep.subr.bf16.mxu0 0
    %2665 = vmatpush1.bf16.msra.mxu0 0
    %2666 = vmatprep.subr.bf16.mxu0 0
    %2667 = vmatpush1.bf16.msra.mxu0 0
    %2668 = vmatprep.subr.bf16.mxu0 0
    %2669 = vmatpush1.bf16.msra.mxu0 0
    %2670 = vmatprep.subr.bf16.mxu0 0
    %2671 = vmatpush1.bf16.msra.mxu0 0
    %2672 = vmatprep.subr.bf16.mxu0 0
    %2673 = vmatpush1.bf16.msra.mxu0 0
    %2674 = vmatprep.subr.bf16.mxu0 0
    %2675 = vmatpush1.bf16.msra.mxu0 0
    %2676 = vmatprep.subr.bf16.mxu0 0
    %2677 = vmatpush1.bf16.msra.mxu0 0
    %2678 = vmatprep.mubr.bf16.mxu0 0
    %2679 = vmatmul.mubr.bf16.gmra.mrb[0].mxu0 %v2406
    %v2680 = vpop.f32.mrb[0].mxu0
    %v2681 = vadd.f32 %v2641, %v2680
    %v2682 = vpop.f32.mrb[0].mxu0
    %v2683 = vpop.f32.mrb[0].mxu0
    %v2684 = vpop.f32.mrb[0].mxu0
    %2685 = vdwg.mxu0
    %v2686 = vmax.f32 %v2681, 0.0
    %v2687 = vpack.c.bf16 %v2686, %v2686
    %v2688 = vld [vmem:[#allocation14] sm:$0xf]
    %v2689 = vld [vmem:[#allocation14 + $0x4] sm:$0xf]
    %v2690 = vld [vmem:[#allocation14 + $0x8] sm:$0xf]
    %v2691 = vld [vmem:[#allocation14 + $0xc] sm:$0xf]
    %v2692 = vld [vmem:[#allocation14 + $0x10] sm:$0xf]
    %v2693 = vld [vmem:[#allocation14 + $0x14] sm:$0xf]
    %v2694 = vld [vmem:[#allocation14 + $0x18] sm:$0xf]
    %v2695 = vld [vmem:[#allocation14 + $0x1c] sm:$0xf]
    %v2696 = vld [vmem:[#allocation14 + $0x20] sm:$0xf]
    %v2697 = vld [vmem:[#allocation14 + $0x24] sm:$0xf]
    %v2698 = vld [vmem:[#allocation14 + $0x28] sm:$0xf]
    %v2699 = vld [vmem:[#allocation14 + $0x2c] sm:$0xf]
    %v2700 = vld [vmem:[#allocation14 + $0x30] sm:$0xf]
    %v2701 = vld [vmem:[#allocation14 + $0x34] sm:$0xf]
    %v2702 = vld [vmem:[#allocation14 + $0x38] sm:$0xf]
    %v2703 = vld [vmem:[#allocation14 + $0x3c] sm:$0xf]
    %v2704 = vld [vmem:[#allocation16] sm:$0x1]
    %v2706 = vlaneseq
    %v2707 = vshrl.u32 %v2706, 7
    %v2708 = vsub.s32 0, %v2707
    %v2709 = vrot.slane %v2704, %v2708
    %v2727 = vunpack.c.l.b16 %v2688
    %v2728 = vunpack.c.l.b16 %v2689
    %v2729 = vunpack.c.l.b16 %v2690
    %v2730 = vunpack.c.l.b16 %v2691
    %v2731 = vunpack.c.l.b16 %v2692
    %v2732 = vunpack.c.l.b16 %v2693
    %v2733 = vunpack.c.l.b16 %v2694
    %v2734 = vunpack.c.l.b16 %v2695
    %v2735 = vunpack.c.l.b16 %v2696
    %v2736 = vunpack.c.l.b16 %v2697
    %v2737 = vunpack.c.l.b16 %v2698
    %v2738 = vunpack.c.l.b16 %v2699
    %v2739 = vunpack.c.l.b16 %v2700
    %v2740 = vunpack.c.l.b16 %v2701
    %v2741 = vunpack.c.l.b16 %v2702
    %v2742 = vunpack.c.l.b16 %v2703
    %v2743 = vpack.c.b16 %v2728, %v2727
    %v2744 = vpack.c.b16 %v2730, %v2729
    %v2745 = vpack.c.b16 %v2732, %v2731
    %v2746 = vpack.c.b16 %v2734, %v2733
    %v2747 = vpack.c.b16 %v2736, %v2735
    %v2748 = vpack.c.b16 %v2738, %v2737
    %v2749 = vpack.c.b16 %v2740, %v2739
    %v2750 = vpack.c.b16 %v2742, %v2741
    %2759 = vmatprep.subr.bf16.mxu0 0
    %2760 = vmatpush1.bf16.msra.mxu0 %v2743
    %2761 = vmatprep.subr.bf16.mxu0 0
    %2762 = vmatpush1.bf16.msra.mxu0 %v2744
    %2763 = vmatprep.subr.bf16.mxu0 0
    %2764 = vmatpush1.bf16.msra.mxu0 %v2745
    %2765 = vmatprep.subr.bf16.mxu0 0
    %2766 = vmatpush1.bf16.msra.mxu0 %v2746
    %2767 = vmatprep.subr.bf16.mxu0 0
    %2768 = vmatpush1.bf16.msra.mxu0 %v2747
    %2769 = vmatprep.subr.bf16.mxu0 0
    %2770 = vmatpush1.bf16.msra.mxu0 %v2748
    %2771 = vmatprep.subr.bf16.mxu0 0
    %2772 = vmatpush1.bf16.msra.mxu0 %v2749
    %2773 = vmatprep.subr.bf16.mxu0 0
    %2774 = vmatpush1.bf16.msra.mxu0 %v2750
    %2775 = vmatprep.subr.bf16.mxu0 0
    %2776 = vmatpush1.bf16.msra.mxu0 0
    %2777 = vmatprep.subr.bf16.mxu0 0
    %2778 = vmatpush1.bf16.msra.mxu0 0
    %2779 = vmatprep.subr.bf16.mxu0 0
    %2780 = vmatpush1.bf16.msra.mxu0 0
    %2781 = vmatprep.subr.bf16.mxu0 0
    %2782 = vmatpush1.bf16.msra.mxu0 0
    %2783 = vmatprep.subr.bf16.mxu0 0
    %2784 = vmatpush1.bf16.msra.mxu0 0
    %2785 = vmatprep.subr.bf16.mxu0 0
    %2786 = vmatpush1.bf16.msra.mxu0 0
    %2787 = vmatprep.subr.bf16.mxu0 0
    %2788 = vmatpush1.bf16.msra.mxu0 0
    %2789 = vmatprep.subr.bf16.mxu0 0
    %2790 = vmatpush1.bf16.msra.mxu0 0
    %2791 = vmatprep.mubr.bf16.mxu0 0
    %2792 = vmatmul.mubr.bf16.gmra.mrb[0].mxu0 %v2687
    %v2793 = vpop.f32.mrb[0].mxu0
    %v2794 = vadd.f32 %v2709, %v2793
    %v2795 = vpop.f32.mrb[0].mxu0
    %v2796 = vpop.f32.mrb[0].mxu0
    %v2797 = vpop.f32.mrb[0].mxu0
    %2798 = vdwg.mxu0
    %v2799 = vxor.u32 %v2794, 2147483648
    %v2800 = vmul.f32 %v2799, 1.442695
    %v2801 = vpow.pop %v2800
    %v2802 = vadd.f32 %v2801, 1.0
    %v2803 = vrcp.pop %v2802
    %v2804 = vmul.f32 1.0, %v2803
    %2805 = vst [vmem:[#allocation17] sm:$0xff] %v2804
    // Predicated region
    $region74: #{mlp_forward.1} parent=1 // pred_check
      _
    $region75: #{mlp_forward.1} parent=1 // pred_check_branch
      %2807 = sbr.rel (0) target = $region77
    $region76: #{mlp_forward.1} parent=1 // pred_region
      %s2809 = ssub.s32 128, 128
      %2810 = vsyncadd [#allocation4], %s2809
      %s2812 = sshll.u32 [#allocation17], 4
      %s2813 = int_to_ptr.vmem [resolvable:$true] %s2812
      %2815 = dma.vmem_to_hbm [thread:$0]  %s2813, 128, %s9, [#allocation4]
    $region77: #{mlp_forward.1} parent=1 // pred_fallthru
      _
    // Predicated region
    $region78: #{mlp_forward.1} parent=1 // pred_check
      _
    $region79: #{mlp_forward.1} parent=1 // pred_check_branch
      %2817 = sbr.rel (0) target = $region81
    $region80: #{mlp_forward.1} parent=1 // pred_region
      %2818 = dma.done [#allocation4], 128
    $region81: #{mlp_forward.1} parent=1 // pred_fallthru
      _
    %2819 = vsyncpa [#allocation3], 1
    %2820 = vsyncpa [#allocation6], 1
    %2821 = vsyncpa [#allocation9], 1
    %2822 = vsyncpa [#allocation12], 1
    %2823 = vsyncpa [#allocation15], 1
    %2824 = vsyncpa [#allocation4], 1

</llo_original>
